<compile_context>
chip_gen: v6e
topology: v6e:2x2x1
jax: 0.10.0
libtpu: 0.0.40
codegen_flags: <defaults>
</compile_context>

<pallas_src>
import math
import functools

import jax
import jax.numpy as jnp
from jax.experimental import pallas as pl
from jax.experimental.pallas import tpu as pltpu


def _attention_kernel(x_ref, w_qkv_ref, w_o_ref, b_qkv_ref, b_o_ref,
                      o_ref, ctx_ref, *, n_heads: int, head_pad: int):
    Bt, N, E = x_ref.shape
    Dp = head_pad                 # lane-aligned (padded) head width
    Ep = n_heads * Dp             # padded "embedding" width of the packed QKV layout
    inv_sqrt_e = 1.0 / math.sqrt(E)

    # Fused QKV projection on the batch-folded (Bt*N, E) view: one MXU matmul,
    # f32 accumulation + f32 bias add.
    x2 = x_ref[...].reshape(Bt * N, E)                                   # bf16
    qkv = jnp.dot(x2, w_qkv_ref[...],
                  preferred_element_type=jnp.float32) + b_qkv_ref[0]     # (Bt*N, 3Ep) f32
    qkv = qkv.reshape(Bt, N, 3 * Ep)

    # Per-head attention. H is small & static; all slices are 128-lane aligned
    # (multiples of Dp), so loads/stores are unmasked and lane-dense.
    for h in range(n_heads):
        q_h = qkv[:, :, h * Dp:(h + 1) * Dp].astype(x_ref.dtype)                  # (Bt,N,Dp) bf16
        k_h = qkv[:, :, Ep + h * Dp:Ep + (h + 1) * Dp].astype(x_ref.dtype)        # (Bt,N,Dp) bf16
        v_h = qkv[:, :, 2 * Ep + h * Dp:2 * Ep + (h + 1) * Dp].astype(x_ref.dtype)

        # energy[b, q, k] = <q_h[b, q], k_h[b, k]> — batched NT matmul, no explicit
        # transpose materialized; padded lanes are zero so they contribute nothing.
        energy = jnp.einsum('bqd,bkd->bqk', q_h, k_h,
                            preferred_element_type=jnp.float32)           # (Bt,N,N) f32

        # Numerically-stable softmax over keys. The normalization AND the module's
        # trailing 1/sqrt(E) factor are applied to the f32 context AFTER the PV
        # matmul (mathematically identical, cheaper, and more bf16-friendly).
        m = jnp.max(energy, axis=-1, keepdims=True)
        p = jnp.exp(energy - m)                                           # f32, values in (0, 1]
        denom = jnp.sum(p, axis=-1, keepdims=True)                        # (Bt,N,1) f32

        ctx_h = jnp.einsum('bqk,bkd->bqd', p.astype(x_ref.dtype), v_h,
                           preferred_element_type=jnp.float32)            # (Bt,N,Dp) f32
        scale = pl.reciprocal(denom, approx=True) * inv_sqrt_e            # EUP reciprocal
        # TODO(synk): attention_dropout > 0.0 not implemented (module default 0.0 -> identity).
        ctx_ref[:, :, h * Dp:(h + 1) * Dp] = (ctx_h * scale).astype(ctx_ref.dtype)

    # Output projection on the batch-folded view (bf16 MXU inputs, f32 accumulate + bias).
    # W_out rows for the padded head lanes are zero, so the padding drops out here.
    ctx2 = ctx_ref[...].reshape(Bt * N, Ep)
    y = jnp.dot(ctx2, w_o_ref[...], preferred_element_type=jnp.float32) + b_o_ref[0]
    o_ref[...] = y.reshape(Bt, N, E).astype(o_ref.dtype)


def prepare_params(params, n_heads: int, mxu_dtype=jnp.bfloat16):
    """One-time host-side packing: fused + 128-lane-aligned head-padded weights.

    Layout of the fused QKV weight (E, 3*Ep), Ep = n_heads * Dp, Dp = round_up(D, 128):
      columns [0, Ep)      : Q, head h occupying [h*Dp, h*Dp + D), rest zero
      columns [Ep, 2*Ep)   : K, same per-head padding
      columns [2*Ep, 3*Ep) : V, same per-head padding
    W_out is padded with matching zero ROWS so ctx_padded @ W_out_padded == ctx @ W_out.
    """
    wq, bq, wk, bk, wv, bv, wo, bo = params
    E = wq.shape[0]
    assert E % n_heads == 0
    D = E // n_heads
    Dp = ((D + 127) // 128) * 128
    Ep = n_heads * Dp

    def pad_w(w):   # (E, H*D) -> (E, H*Dp), zero-pad each head's columns to Dp
        return jnp.pad(w.reshape(E, n_heads, D),
                       ((0, 0), (0, 0), (0, Dp - D))).reshape(E, Ep)

    def pad_b(b):   # (H*D,) -> (H*Dp,)
        return jnp.pad(b.reshape(n_heads, D), ((0, 0), (0, Dp - D))).reshape(Ep)

    w_qkv = jnp.concatenate([pad_w(wq), pad_w(wk), pad_w(wv)], axis=1).astype(mxu_dtype)
    b_qkv = jnp.concatenate([pad_b(bq), pad_b(bk), pad_b(bv)]).reshape(1, 3 * Ep).astype(jnp.float32)
    w_o = jnp.pad(wo.reshape(n_heads, D, E),
                  ((0, 0), (0, Dp - D), (0, 0))).reshape(Ep, E).astype(mxu_dtype)
    b_o = bo.reshape(1, E).astype(jnp.float32)

    return {
        "w_qkv": w_qkv, "b_qkv": b_qkv, "w_o": w_o, "b_o": b_o,
        "n_heads": n_heads, "n_embedding": E, "head_pad": Dp, "mxu_dtype": mxu_dtype,
    }


def attention_forward(x, prep, batch_block=None):
    # TODO(synk): optional `mask` argument not implemented (forward is called with mask=None).
    B, N, E = x.shape
    assert E == prep["n_embedding"]
    H = prep["n_heads"]
    Dp = prep["head_pad"]
    Ep = H * Dp
    mxu_dtype = prep["mxu_dtype"]

    # Fold batch into each grid step for bigger MXU M, but keep >= 2 grid steps so
    # both v7x TensorCores get work (v5e/v6e have a single TC, so this is free there).
    if batch_block is None:
        batch_block = 1
        if B >= 4:
            for bt in range(B // 2, 0, -1):
                if B % bt == 0:
                    batch_block = bt
                    break
    assert B % batch_block == 0, "batch_block must divide the batch size"
    Bt = batch_block

    x_mx = x.astype(mxu_dtype)   # halves activation DMA bytes; accumulation stays f32

    kernel = functools.partial(_attention_kernel, n_heads=H, head_pad=Dp)

    return pl.pallas_call(
        kernel,
        out_shape=jax.ShapeDtypeStruct((B, N, E), x.dtype),
        grid_spec=pltpu.PrefetchScalarGridSpec(
            num_scalar_prefetch=0,
            grid=(B // Bt,),
            in_specs=[
                pl.BlockSpec((Bt, N, E), lambda b: (b, 0, 0)),      # x
                pl.BlockSpec((E, 3 * Ep), lambda b: (0, 0)),        # W_qkv (fused, head-padded)
                pl.BlockSpec((Ep, E), lambda b: (0, 0)),            # W_out (row-padded)
                pl.BlockSpec((1, 3 * Ep), lambda b: (0, 0)),        # b_qkv (fused, head-padded)
                pl.BlockSpec((1, E), lambda b: (0, 0)),             # b_out
            ],
            out_specs=pl.BlockSpec((Bt, N, E), lambda b: (b, 0, 0)),
            scratch_shapes=[pltpu.VMEM((Bt, N, Ep), mxu_dtype)],    # bf16 per-head context
        ),
        compiler_params=pltpu.CompilerParams(
            dimension_semantics=("parallel",),                       # batch shards across TCs (v7x)
            vmem_limit_bytes=48 * 1024 * 1024,
        ),
    )(x_mx, prep["w_qkv"], prep["w_o"], prep["b_qkv"], prep["b_o"])


def _reference(x, params, n_heads):
    """Pure-JAX f32 reference reproducing the PyTorch forward exactly."""
    B, N, E = x.shape
    D = E // n_heads
    wq, bq, wk, bk, wv, bv, wo, bo = params

    def proj(w, b):
        return (x @ w + b).reshape(B, N, n_heads, D).transpose(0, 2, 1, 3)  # b h n d

    q, k, v = proj(wq, bq), proj(wk, bk), proj(wv, bv)
    energy = jnp.einsum('bhqd,bhkd->bhqk', q, k)
    attn = jax.nn.softmax(energy, axis=-1) / math.sqrt(E)
    ctx = jnp.einsum('bhqk,bhkd->bhqd', attn, v)
    ctx = ctx.transpose(0, 2, 1, 3).reshape(B, N, E)
    return ctx @ wo + bo


def init_params(key, n_embedding):
    """Deterministic synthetic parameters (nn.Linear-like shapes, stored as [in, out])."""
    E = n_embedding
    keys = jax.random.split(key, 8)
    scale = 1.0 / math.sqrt(E)
    wq = jax.random.uniform(keys[0], (E, E), jnp.float32, -scale, scale)
    bq = jax.random.uniform(keys[1], (E,), jnp.float32, -scale, scale)
    wk = jax.random.uniform(keys[2], (E, E), jnp.float32, -scale, scale)
    bk = jax.random.uniform(keys[3], (E,), jnp.float32, -scale, scale)
    wv = jax.random.uniform(keys[4], (E, E), jnp.float32, -scale, scale)
    bv = jax.random.uniform(keys[5], (E,), jnp.float32, -scale, scale)
    wo = jax.random.uniform(keys[6], (E, E), jnp.float32, -scale, scale)
    bo = jax.random.uniform(keys[7], (E,), jnp.float32, -scale, scale)
    return (wq, bq, wk, bk, wv, bv, wo, bo)


if __name__ == "__main__":
    # Small test shapes (real ViT: N~197-1024, E>=768, D=64 — the padded-head layout
    # is designed for those; here D=4 is padded to Dp=128).
    B, N, E, H = 2, 8, 32, 8   # batch, seq, embedding, heads  (D = E // H = 4)

    key = jax.random.PRNGKey(0)
    kx, kp = jax.random.split(key)
    x = jax.random.normal(kx, (B, N, E), jnp.float32)
    params = init_params(kp, E)

    # One-time parameter preparation (fused + padded + bf16-cast weights).
    prep = prepare_params(params, n_heads=H)

    out = attention_forward(x, prep)
    out = jax.block_until_ready(out)

    ref = _reference(x, params, H)
    assert out.shape == (B, N, E)
    # bf16 MXU inputs + approximate reciprocal -> loosened tolerance vs f32 reference.
    max_err = float(jnp.max(jnp.abs(out - ref)))
    assert jnp.allclose(out, ref, atol=3e-2, rtol=3e-2), f"mismatch vs reference (max abs err={max_err})"

    print("KERNEL_OK")
</pallas_src>

<mosaic_0001>
module attributes {stable_mosaic.version = 11 : i64} {
  func.func @_attention_kernel(%arg0: i32, %arg1: memref<1x8x32xbf16, #tpu.memory_space<vmem>>, %arg2: memref<32x3072xbf16, #tpu.memory_space<vmem>>, %arg3: memref<1024x32xbf16, #tpu.memory_space<vmem>>, %arg4: memref<1x3072xf32, #tpu.memory_space<vmem>>, %arg5: memref<1x32xf32, #tpu.memory_space<vmem>>, %arg6: memref<1x8x32xf32, #tpu.memory_space<vmem>>, %arg7: memref<1x8x1024xbf16, #tpu.memory_space<vmem>>) attributes {dimension_semantics = [#tpu.dimension_semantics<parallel>], iteration_bounds = array<i64: 2>, scalar_prefetch = 0 : i64, scratch_operands = 1 : i64, tpu.core_type = #tpu.core_type<tc>, window_params = [{transform_indices = @transform_0, window_bounds = array<i64: 1, 8, 32>}, {pipeline_mode = #tpu.pipeline_mode<synchronous>, transform_indices = @transform_1, window_bounds = array<i64: 32, 3072>}, {pipeline_mode = #tpu.pipeline_mode<synchronous>, transform_indices = @transform_2, window_bounds = array<i64: 1024, 32>}, {pipeline_mode = #tpu.pipeline_mode<synchronous>, transform_indices = @transform_3, window_bounds = array<i64: 1, 3072>}, {pipeline_mode = #tpu.pipeline_mode<synchronous>, transform_indices = @transform_4, window_bounds = array<i64: 1, 32>}, {transform_indices = @transform_5, window_bounds = array<i64: 1, 8, 32>}]} {
    %c0 = arith.constant 0 : index
    %c0_0 = arith.constant 0 : index
    %c0_1 = arith.constant 0 : index
    %0 = vector.load %arg1[%c0, %c0_0, %c0_1] : memref<1x8x32xbf16, #tpu.memory_space<vmem>>, vector<1x8x32xbf16>
    %1 = vector.shape_cast %0 : vector<1x8x32xbf16> to vector<8x32xbf16>
    %c0_2 = arith.constant 0 : index
    %c0_3 = arith.constant 0 : index
    %2 = vector.load %arg2[%c0_2, %c0_3] : memref<32x3072xbf16, #tpu.memory_space<vmem>>, vector<32x3072xbf16>
    %cst = arith.constant dense<0.000000e+00> : vector<8x3072xf32>
    %3 = tpu.matmul %1, %2, %cst {dimension_numbers = #tpu.dot_dimension_numbers<[1], [0], [0], [1], [0, 0, 1, 1], [], []>} : vector<8x32xbf16>, vector<32x3072xbf16>, vector<8x3072xf32> -> vector<8x3072xf32>
    %c0_4 = arith.constant 0 : index
    %c0_5 = arith.constant 0 : index
    %4 = vector.load %arg4[%c0_4, %c0_5] : memref<1x3072xf32, #tpu.memory_space<vmem>>, vector<1x3072xf32>
    %5 = vector.shape_cast %4 : vector<1x3072xf32> to vector<3072xf32>
    %6 = vector.shape_cast %5 : vector<3072xf32> to vector<1x3072xf32>
    %7 = vector.broadcast %6 : vector<1x3072xf32> to vector<8x3072xf32>
    %8 = arith.addf %3, %7 : vector<8x3072xf32>
    %9 = vector.shape_cast %8 : vector<8x3072xf32> to vector<1x8x3072xf32>
    %10 = vector.extract_strided_slice %9 {offsets = [0, 0, 0], sizes = [1, 8, 128], strides = [1, 1, 1]} : vector<1x8x3072xf32> to vector<1x8x128xf32>
    %11 = arith.truncf %10 : vector<1x8x128xf32> to vector<1x8x128xbf16>
    %12 = vector.extract_strided_slice %9 {offsets = [0, 0, 1024], sizes = [1, 8, 128], strides = [1, 1, 1]} : vector<1x8x3072xf32> to vector<1x8x128xf32>
    %13 = arith.truncf %12 : vector<1x8x128xf32> to vector<1x8x128xbf16>
    %14 = vector.extract_strided_slice %9 {offsets = [0, 0, 2048], sizes = [1, 8, 128], strides = [1, 1, 1]} : vector<1x8x3072xf32> to vector<1x8x128xf32>
    %15 = arith.truncf %14 : vector<1x8x128xf32> to vector<1x8x128xbf16>
    "tpu.trace_start"() <{level = 10 : i32, message = "bqd,bkd->bqk"}> : () -> ()
    %cst_6 = arith.constant dense<0.000000e+00> : vector<1x8x8xf32>
    %16 = tpu.matmul %11, %13, %cst_6 {dimension_numbers = #tpu.dot_dimension_numbers<[2], [2], [1], [1], [0, 0, 0, 1, 1, 1], [0], [0]>} : vector<1x8x128xbf16>, vector<1x8x128xbf16>, vector<1x8x8xf32> -> vector<1x8x8xf32>
    "tpu.trace_stop"() : () -> ()
    %cst_7 = arith.constant dense<0xFF800000> : vector<1x8xf32>
    %17 = vector.multi_reduction <maximumf>, %16, %cst_7 [2] : vector<1x8x8xf32> to vector<1x8xf32>
    %18 = vector.shape_cast %17 : vector<1x8xf32> to vector<1x8x1xf32>
    %19 = vector.broadcast %18 : vector<1x8x1xf32> to vector<1x8x8xf32>
    %20 = arith.subf %16, %19 : vector<1x8x8xf32>
    %21 = math.exp %20 : vector<1x8x8xf32>
    %cst_8 = arith.constant dense<0.000000e+00> : vector<1x8xf32>
    %22 = vector.multi_reduction <add>, %21, %cst_8 [2] : vector<1x8x8xf32> to vector<1x8xf32>
    %23 = vector.shape_cast %22 : vector<1x8xf32> to vector<1x8x1xf32>
    %24 = arith.truncf %21 : vector<1x8x8xf32> to vector<1x8x8xbf16>
    "tpu.trace_start"() <{level = 10 : i32, message = "bqk,bkd->bqd"}> : () -> ()
    %cst_9 = arith.constant dense<0.000000e+00> : vector<1x8x128xf32>
    %25 = tpu.matmul %24, %15, %cst_9 {dimension_numbers = #tpu.dot_dimension_numbers<[2], [1], [1], [2], [0, 0, 0, 1, 1, 2], [0], [0]>} : vector<1x8x8xbf16>, vector<1x8x128xbf16>, vector<1x8x128xf32> -> vector<1x8x128xf32>
    "tpu.trace_stop"() : () -> ()
    %26 = tpu.reciprocal %23 {approx = true} : vector<1x8x1xf32> -> vector<1x8x1xf32>
    %cst_10 = arith.constant 0.176776692 : f32
    %27 = vector.broadcast %cst_10 : f32 to vector<1x8x1xf32>
    %28 = arith.mulf %26, %27 : vector<1x8x1xf32>
    %29 = vector.broadcast %28 : vector<1x8x1xf32> to vector<1x8x128xf32>
    %30 = arith.mulf %25, %29 : vector<1x8x128xf32>
    %31 = arith.truncf %30 : vector<1x8x128xf32> to vector<1x8x128xbf16>
    %c0_11 = arith.constant 0 : index
    %c0_12 = arith.constant 0 : index
    %c0_13 = arith.constant 0 : index
    %32 = vector.load %arg7[%c0_11, %c0_12, %c0_13] : memref<1x8x1024xbf16, #tpu.memory_space<vmem>>, vector<1x8x128xbf16>
    tpu.vector_store %arg7[%c0_11, %c0_12, %c0_13], %31 {strides = array<i32>} : memref<1x8x1024xbf16, #tpu.memory_space<vmem>>, vector<1x8x128xbf16>,
    %33 = vector.extract_strided_slice %9 {offsets = [0, 0, 128], sizes = [1, 8, 128], strides = [1, 1, 1]} : vector<1x8x3072xf32> to vector<1x8x128xf32>
    %34 = arith.truncf %33 : vector<1x8x128xf32> to vector<1x8x128xbf16>
    %35 = vector.extract_strided_slice %9 {offsets = [0, 0, 1152], sizes = [1, 8, 128], strides = [1, 1, 1]} : vector<1x8x3072xf32> to vector<1x8x128xf32>
    %36 = arith.truncf %35 : vector<1x8x128xf32> to vector<1x8x128xbf16>
    %37 = vector.extract_strided_slice %9 {offsets = [0, 0, 2176], sizes = [1, 8, 128], strides = [1, 1, 1]} : vector<1x8x3072xf32> to vector<1x8x128xf32>
    %38 = arith.truncf %37 : vector<1x8x128xf32> to vector<1x8x128xbf16>
    "tpu.trace_start"() <{level = 10 : i32, message = "bqd,bkd->bqk"}> : () -> ()
    %cst_14 = arith.constant dense<0.000000e+00> : vector<1x8x8xf32>
    %39 = tpu.matmul %34, %36, %cst_14 {dimension_numbers = #tpu.dot_dimension_numbers<[2], [2], [1], [1], [0, 0, 0, 1, 1, 1], [0], [0]>} : vector<1x8x128xbf16>, vector<1x8x128xbf16>, vector<1x8x8xf32> -> vector<1x8x8xf32>
    "tpu.trace_stop"() : () -> ()
    %cst_15 = arith.constant dense<0xFF800000> : vector<1x8xf32>
    %40 = vector.multi_reduction <maximumf>, %39, %cst_15 [2] : vector<1x8x8xf32> to vector<1x8xf32>
    %41 = vector.shape_cast %40 : vector<1x8xf32> to vector<1x8x1xf32>
    %42 = vector.broadcast %41 : vector<1x8x1xf32> to vector<1x8x8xf32>
    %43 = arith.subf %39, %42 : vector<1x8x8xf32>
    %44 = math.exp %43 : vector<1x8x8xf32>
    %cst_16 = arith.constant dense<0.000000e+00> : vector<1x8xf32>
    %45 = vector.multi_reduction <add>, %44, %cst_16 [2] : vector<1x8x8xf32> to vector<1x8xf32>
    %46 = vector.shape_cast %45 : vector<1x8xf32> to vector<1x8x1xf32>
    %47 = arith.truncf %44 : vector<1x8x8xf32> to vector<1x8x8xbf16>
    "tpu.trace_start"() <{level = 10 : i32, message = "bqk,bkd->bqd"}> : () -> ()
    %cst_17 = arith.constant dense<0.000000e+00> : vector<1x8x128xf32>
    %48 = tpu.matmul %47, %38, %cst_17 {dimension_numbers = #tpu.dot_dimension_numbers<[2], [1], [1], [2], [0, 0, 0, 1, 1, 2], [0], [0]>} : vector<1x8x8xbf16>, vector<1x8x128xbf16>, vector<1x8x128xf32> -> vector<1x8x128xf32>
    "tpu.trace_stop"() : () -> ()
    %49 = tpu.reciprocal %46 {approx = true} : vector<1x8x1xf32> -> vector<1x8x1xf32>
    %cst_18 = arith.constant 0.176776692 : f32
    %50 = vector.broadcast %cst_18 : f32 to vector<1x8x1xf32>
    %51 = arith.mulf %49, %50 : vector<1x8x1xf32>
    %52 = vector.broadcast %51 : vector<1x8x1xf32> to vector<1x8x128xf32>
    %53 = arith.mulf %48, %52 : vector<1x8x128xf32>
    %54 = arith.truncf %53 : vector<1x8x128xf32> to vector<1x8x128xbf16>
    %c0_19 = arith.constant 0 : index
    %c0_20 = arith.constant 0 : index
    %c128 = arith.constant 128 : index
    %55 = vector.load %arg7[%c0_19, %c0_20, %c128] : memref<1x8x1024xbf16, #tpu.memory_space<vmem>>, vector<1x8x128xbf16>
    tpu.vector_store %arg7[%c0_19, %c0_20, %c128], %54 {strides = array<i32>} : memref<1x8x1024xbf16, #tpu.memory_space<vmem>>, vector<1x8x128xbf16>,
    %56 = vector.extract_strided_slice %9 {offsets = [0, 0, 256], sizes = [1, 8, 128], strides = [1, 1, 1]} : vector<1x8x3072xf32> to vector<1x8x128xf32>
    %57 = arith.truncf %56 : vector<1x8x128xf32> to vector<1x8x128xbf16>
    %58 = vector.extract_strided_slice %9 {offsets = [0, 0, 1280], sizes = [1, 8, 128], strides = [1, 1, 1]} : vector<1x8x3072xf32> to vector<1x8x128xf32>
    %59 = arith.truncf %58 : vector<1x8x128xf32> to vector<1x8x128xbf16>
    %60 = vector.extract_strided_slice %9 {offsets = [0, 0, 2304], sizes = [1, 8, 128], strides = [1, 1, 1]} : vector<1x8x3072xf32> to vector<1x8x128xf32>
    %61 = arith.truncf %60 : vector<1x8x128xf32> to vector<1x8x128xbf16>
    "tpu.trace_start"() <{level = 10 : i32, message = "bqd,bkd->bqk"}> : () -> ()
    %cst_21 = arith.constant dense<0.000000e+00> : vector<1x8x8xf32>
    %62 = tpu.matmul %57, %59, %cst_21 {dimension_numbers = #tpu.dot_dimension_numbers<[2], [2], [1], [1], [0, 0, 0, 1, 1, 1], [0], [0]>} : vector<1x8x128xbf16>, vector<1x8x128xbf16>, vector<1x8x8xf32> -> vector<1x8x8xf32>
    "tpu.trace_stop"() : () -> ()
    %cst_22 = arith.constant dense<0xFF800000> : vector<1x8xf32>
    %63 = vector.multi_reduction <maximumf>, %62, %cst_22 [2] : vector<1x8x8xf32> to vector<1x8xf32>
    %64 = vector.shape_cast %63 : vector<1x8xf32> to vector<1x8x1xf32>
    %65 = vector.broadcast %64 : vector<1x8x1xf32> to vector<1x8x8xf32>
    %66 = arith.subf %62, %65 : vector<1x8x8xf32>
    %67 = math.exp %66 : vector<1x8x8xf32>
    %cst_23 = arith.constant dense<0.000000e+00> : vector<1x8xf32>
    %68 = vector.multi_reduction <add>, %67, %cst_23 [2] : vector<1x8x8xf32> to vector<1x8xf32>
    %69 = vector.shape_cast %68 : vector<1x8xf32> to vector<1x8x1xf32>
    %70 = arith.truncf %67 : vector<1x8x8xf32> to vector<1x8x8xbf16>
    "tpu.trace_start"() <{level = 10 : i32, message = "bqk,bkd->bqd"}> : () -> ()
    %cst_24 = arith.constant dense<0.000000e+00> : vector<1x8x128xf32>
    %71 = tpu.matmul %70, %61, %cst_24 {dimension_numbers = #tpu.dot_dimension_numbers<[2], [1], [1], [2], [0, 0, 0, 1, 1, 2], [0], [0]>} : vector<1x8x8xbf16>, vector<1x8x128xbf16>, vector<1x8x128xf32> -> vector<1x8x128xf32>
    "tpu.trace_stop"() : () -> ()
    %72 = tpu.reciprocal %69 {approx = true} : vector<1x8x1xf32> -> vector<1x8x1xf32>
    %cst_25 = arith.constant 0.176776692 : f32
    %73 = vector.broadcast %cst_25 : f32 to vector<1x8x1xf32>
    %74 = arith.mulf %72, %73 : vector<1x8x1xf32>
    %75 = vector.broadcast %74 : vector<1x8x1xf32> to vector<1x8x128xf32>
    %76 = arith.mulf %71, %75 : vector<1x8x128xf32>
    %77 = arith.truncf %76 : vector<1x8x128xf32> to vector<1x8x128xbf16>
    %c0_26 = arith.constant 0 : index
    %c0_27 = arith.constant 0 : index
    %c256 = arith.constant 256 : index
    %78 = vector.load %arg7[%c0_26, %c0_27, %c256] : memref<1x8x1024xbf16, #tpu.memory_space<vmem>>, vector<1x8x128xbf16>
    tpu.vector_store %arg7[%c0_26, %c0_27, %c256], %77 {strides = array<i32>} : memref<1x8x1024xbf16, #tpu.memory_space<vmem>>, vector<1x8x128xbf16>,
    %79 = vector.extract_strided_slice %9 {offsets = [0, 0, 384], sizes = [1, 8, 128], strides = [1, 1, 1]} : vector<1x8x3072xf32> to vector<1x8x128xf32>
    %80 = arith.truncf %79 : vector<1x8x128xf32> to vector<1x8x128xbf16>
    %81 = vector.extract_strided_slice %9 {offsets = [0, 0, 1408], sizes = [1, 8, 128], strides = [1, 1, 1]} : vector<1x8x3072xf32> to vector<1x8x128xf32>
    %82 = arith.truncf %81 : vector<1x8x128xf32> to vector<1x8x128xbf16>
    %83 = vector.extract_strided_slice %9 {offsets = [0, 0, 2432], sizes = [1, 8, 128], strides = [1, 1, 1]} : vector<1x8x3072xf32> to vector<1x8x128xf32>
    %84 = arith.truncf %83 : vector<1x8x128xf32> to vector<1x8x128xbf16>
    "tpu.trace_start"() <{level = 10 : i32, message = "bqd,bkd->bqk"}> : () -> ()
    %cst_28 = arith.constant dense<0.000000e+00> : vector<1x8x8xf32>
    %85 = tpu.matmul %80, %82, %cst_28 {dimension_numbers = #tpu.dot_dimension_numbers<[2], [2], [1], [1], [0, 0, 0, 1, 1, 1], [0], [0]>} : vector<1x8x128xbf16>, vector<1x8x128xbf16>, vector<1x8x8xf32> -> vector<1x8x8xf32>
    "tpu.trace_stop"() : () -> ()
    %cst_29 = arith.constant dense<0xFF800000> : vector<1x8xf32>
    %86 = vector.multi_reduction <maximumf>, %85, %cst_29 [2] : vector<1x8x8xf32> to vector<1x8xf32>
    %87 = vector.shape_cast %86 : vector<1x8xf32> to vector<1x8x1xf32>
    %88 = vector.broadcast %87 : vector<1x8x1xf32> to vector<1x8x8xf32>
    %89 = arith.subf %85, %88 : vector<1x8x8xf32>
    %90 = math.exp %89 : vector<1x8x8xf32>
    %cst_30 = arith.constant dense<0.000000e+00> : vector<1x8xf32>
    %91 = vector.multi_reduction <add>, %90, %cst_30 [2] : vector<1x8x8xf32> to vector<1x8xf32>
    %92 = vector.shape_cast %91 : vector<1x8xf32> to vector<1x8x1xf32>
    %93 = arith.truncf %90 : vector<1x8x8xf32> to vector<1x8x8xbf16>
    "tpu.trace_start"() <{level = 10 : i32, message = "bqk,bkd->bqd"}> : () -> ()
    %cst_31 = arith.constant dense<0.000000e+00> : vector<1x8x128xf32>
    %94 = tpu.matmul %93, %84, %cst_31 {dimension_numbers = #tpu.dot_dimension_numbers<[2], [1], [1], [2], [0, 0, 0, 1, 1, 2], [0], [0]>} : vector<1x8x8xbf16>, vector<1x8x128xbf16>, vector<1x8x128xf32> -> vector<1x8x128xf32>
    "tpu.trace_stop"() : () -> ()
    %95 = tpu.reciprocal %92 {approx = true} : vector<1x8x1xf32> -> vector<1x8x1xf32>
    %cst_32 = arith.constant 0.176776692 : f32
    %96 = vector.broadcast %cst_32 : f32 to vector<1x8x1xf32>
    %97 = arith.mulf %95, %96 : vector<1x8x1xf32>
    %98 = vector.broadcast %97 : vector<1x8x1xf32> to vector<1x8x128xf32>
    %99 = arith.mulf %94, %98 : vector<1x8x128xf32>
    %100 = arith.truncf %99 : vector<1x8x128xf32> to vector<1x8x128xbf16>
    %c0_33 = arith.constant 0 : index
    %c0_34 = arith.constant 0 : index
    %c384 = arith.constant 384 : index
    %101 = vector.load %arg7[%c0_33, %c0_34, %c384] : memref<1x8x1024xbf16, #tpu.memory_space<vmem>>, vector<1x8x128xbf16>
    tpu.vector_store %arg7[%c0_33, %c0_34, %c384], %100 {strides = array<i32>} : memref<1x8x1024xbf16, #tpu.memory_space<vmem>>, vector<1x8x128xbf16>,
    %102 = vector.extract_strided_slice %9 {offsets = [0, 0, 512], sizes = [1, 8, 128], strides = [1, 1, 1]} : vector<1x8x3072xf32> to vector<1x8x128xf32>
    %103 = arith.truncf %102 : vector<1x8x128xf32> to vector<1x8x128xbf16>
    %104 = vector.extract_strided_slice %9 {offsets = [0, 0, 1536], sizes = [1, 8, 128], strides = [1, 1, 1]} : vector<1x8x3072xf32> to vector<1x8x128xf32>
    %105 = arith.truncf %104 : vector<1x8x128xf32> to vector<1x8x128xbf16>
    %106 = vector.extract_strided_slice %9 {offsets = [0, 0, 2560], sizes = [1, 8, 128], strides = [1, 1, 1]} : vector<1x8x3072xf32> to vector<1x8x128xf32>
    %107 = arith.truncf %106 : vector<1x8x128xf32> to vector<1x8x128xbf16>
    "tpu.trace_start"() <{level = 10 : i32, message = "bqd,bkd->bqk"}> : () -> ()
    %cst_35 = arith.constant dense<0.000000e+00> : vector<1x8x8xf32>
    %108 = tpu.matmul %103, %105, %cst_35 {dimension_numbers = #tpu.dot_dimension_numbers<[2], [2], [1], [1], [0, 0, 0, 1, 1, 1], [0], [0]>} : vector<1x8x128xbf16>, vector<1x8x128xbf16>, vector<1x8x8xf32> -> vector<1x8x8xf32>
    "tpu.trace_stop"() : () -> ()
    %cst_36 = arith.constant dense<0xFF800000> : vector<1x8xf32>
    %109 = vector.multi_reduction <maximumf>, %108, %cst_36 [2] : vector<1x8x8xf32> to vector<1x8xf32>
    %110 = vector.shape_cast %109 : vector<1x8xf32> to vector<1x8x1xf32>
    %111 = vector.broadcast %110 : vector<1x8x1xf32> to vector<1x8x8xf32>
    %112 = arith.subf %108, %111 : vector<1x8x8xf32>
    %113 = math.exp %112 : vector<1x8x8xf32>
    %cst_37 = arith.constant dense<0.000000e+00> : vector<1x8xf32>
    %114 = vector.multi_reduction <add>, %113, %cst_37 [2] : vector<1x8x8xf32> to vector<1x8xf32>
    %115 = vector.shape_cast %114 : vector<1x8xf32> to vector<1x8x1xf32>
    %116 = arith.truncf %113 : vector<1x8x8xf32> to vector<1x8x8xbf16>
    "tpu.trace_start"() <{level = 10 : i32, message = "bqk,bkd->bqd"}> : () -> ()
    %cst_38 = arith.constant dense<0.000000e+00> : vector<1x8x128xf32>
    %117 = tpu.matmul %116, %107, %cst_38 {dimension_numbers = #tpu.dot_dimension_numbers<[2], [1], [1], [2], [0, 0, 0, 1, 1, 2], [0], [0]>} : vector<1x8x8xbf16>, vector<1x8x128xbf16>, vector<1x8x128xf32> -> vector<1x8x128xf32>
    "tpu.trace_stop"() : () -> ()
    %118 = tpu.reciprocal %115 {approx = true} : vector<1x8x1xf32> -> vector<1x8x1xf32>
    %cst_39 = arith.constant 0.176776692 : f32
    %119 = vector.broadcast %cst_39 : f32 to vector<1x8x1xf32>
    %120 = arith.mulf %118, %119 : vector<1x8x1xf32>
    %121 = vector.broadcast %120 : vector<1x8x1xf32> to vector<1x8x128xf32>
    %122 = arith.mulf %117, %121 : vector<1x8x128xf32>
    %123 = arith.truncf %122 : vector<1x8x128xf32> to vector<1x8x128xbf16>
    %c0_40 = arith.constant 0 : index
    %c0_41 = arith.constant 0 : index
    %c512 = arith.constant 512 : index
    %124 = vector.load %arg7[%c0_40, %c0_41, %c512] : memref<1x8x1024xbf16, #tpu.memory_space<vmem>>, vector<1x8x128xbf16>
    tpu.vector_store %arg7[%c0_40, %c0_41, %c512], %123 {strides = array<i32>} : memref<1x8x1024xbf16, #tpu.memory_space<vmem>>, vector<1x8x128xbf16>,
    %125 = vector.extract_strided_slice %9 {offsets = [0, 0, 640], sizes = [1, 8, 128], strides = [1, 1, 1]} : vector<1x8x3072xf32> to vector<1x8x128xf32>
    %126 = arith.truncf %125 : vector<1x8x128xf32> to vector<1x8x128xbf16>
    %127 = vector.extract_strided_slice %9 {offsets = [0, 0, 1664], sizes = [1, 8, 128], strides = [1, 1, 1]} : vector<1x8x3072xf32> to vector<1x8x128xf32>
    %128 = arith.truncf %127 : vector<1x8x128xf32> to vector<1x8x128xbf16>
    %129 = vector.extract_strided_slice %9 {offsets = [0, 0, 2688], sizes = [1, 8, 128], strides = [1, 1, 1]} : vector<1x8x3072xf32> to vector<1x8x128xf32>
    %130 = arith.truncf %129 : vector<1x8x128xf32> to vector<1x8x128xbf16>
    "tpu.trace_start"() <{level = 10 : i32, message = "bqd,bkd->bqk"}> : () -> ()
    %cst_42 = arith.constant dense<0.000000e+00> : vector<1x8x8xf32>
    %131 = tpu.matmul %126, %128, %cst_42 {dimension_numbers = #tpu.dot_dimension_numbers<[2], [2], [1], [1], [0, 0, 0, 1, 1, 1], [0], [0]>} : vector<1x8x128xbf16>, vector<1x8x128xbf16>, vector<1x8x8xf32> -> vector<1x8x8xf32>
    "tpu.trace_stop"() : () -> ()
    %cst_43 = arith.constant dense<0xFF800000> : vector<1x8xf32>
    %132 = vector.multi_reduction <maximumf>, %131, %cst_43 [2] : vector<1x8x8xf32> to vector<1x8xf32>
    %133 = vector.shape_cast %132 : vector<1x8xf32> to vector<1x8x1xf32>
    %134 = vector.broadcast %133 : vector<1x8x1xf32> to vector<1x8x8xf32>
    %135 = arith.subf %131, %134 : vector<1x8x8xf32>
    %136 = math.exp %135 : vector<1x8x8xf32>
    %cst_44 = arith.constant dense<0.000000e+00> : vector<1x8xf32>
    %137 = vector.multi_reduction <add>, %136, %cst_44 [2] : vector<1x8x8xf32> to vector<1x8xf32>
    %138 = vector.shape_cast %137 : vector<1x8xf32> to vector<1x8x1xf32>
    %139 = arith.truncf %136 : vector<1x8x8xf32> to vector<1x8x8xbf16>
    "tpu.trace_start"() <{level = 10 : i32, message = "bqk,bkd->bqd"}> : () -> ()
    %cst_45 = arith.constant dense<0.000000e+00> : vector<1x8x128xf32>
    %140 = tpu.matmul %139, %130, %cst_45 {dimension_numbers = #tpu.dot_dimension_numbers<[2], [1], [1], [2], [0, 0, 0, 1, 1, 2], [0], [0]>} : vector<1x8x8xbf16>, vector<1x8x128xbf16>, vector<1x8x128xf32> -> vector<1x8x128xf32>
    "tpu.trace_stop"() : () -> ()
    %141 = tpu.reciprocal %138 {approx = true} : vector<1x8x1xf32> -> vector<1x8x1xf32>
    %cst_46 = arith.constant 0.176776692 : f32
    %142 = vector.broadcast %cst_46 : f32 to vector<1x8x1xf32>
    %143 = arith.mulf %141, %142 : vector<1x8x1xf32>
    %144 = vector.broadcast %143 : vector<1x8x1xf32> to vector<1x8x128xf32>
    %145 = arith.mulf %140, %144 : vector<1x8x128xf32>
    %146 = arith.truncf %145 : vector<1x8x128xf32> to vector<1x8x128xbf16>
    %c0_47 = arith.constant 0 : index
    %c0_48 = arith.constant 0 : index
    %c640 = arith.constant 640 : index
    %147 = vector.load %arg7[%c0_47, %c0_48, %c640] : memref<1x8x1024xbf16, #tpu.memory_space<vmem>>, vector<1x8x128xbf16>
    tpu.vector_store %arg7[%c0_47, %c0_48, %c640], %146 {strides = array<i32>} : memref<1x8x1024xbf16, #tpu.memory_space<vmem>>, vector<1x8x128xbf16>,
    %148 = vector.extract_strided_slice %9 {offsets = [0, 0, 768], sizes = [1, 8, 128], strides = [1, 1, 1]} : vector<1x8x3072xf32> to vector<1x8x128xf32>
    %149 = arith.truncf %148 : vector<1x8x128xf32> to vector<1x8x128xbf16>
    %150 = vector.extract_strided_slice %9 {offsets = [0, 0, 1792], sizes = [1, 8, 128], strides = [1, 1, 1]} : vector<1x8x3072xf32> to vector<1x8x128xf32>
    %151 = arith.truncf %150 : vector<1x8x128xf32> to vector<1x8x128xbf16>
    %152 = vector.extract_strided_slice %9 {offsets = [0, 0, 2816], sizes = [1, 8, 128], strides = [1, 1, 1]} : vector<1x8x3072xf32> to vector<1x8x128xf32>
    %153 = arith.truncf %152 : vector<1x8x128xf32> to vector<1x8x128xbf16>
    "tpu.trace_start"() <{level = 10 : i32, message = "bqd,bkd->bqk"}> : () -> ()
    %cst_49 = arith.constant dense<0.000000e+00> : vector<1x8x8xf32>
    %154 = tpu.matmul %149, %151, %cst_49 {dimension_numbers = #tpu.dot_dimension_numbers<[2], [2], [1], [1], [0, 0, 0, 1, 1, 1], [0], [0]>} : vector<1x8x128xbf16>, vector<1x8x128xbf16>, vector<1x8x8xf32> -> vector<1x8x8xf32>
    "tpu.trace_stop"() : () -> ()
    %cst_50 = arith.constant dense<0xFF800000> : vector<1x8xf32>
    %155 = vector.multi_reduction <maximumf>, %154, %cst_50 [2] : vector<1x8x8xf32> to vector<1x8xf32>
    %156 = vector.shape_cast %155 : vector<1x8xf32> to vector<1x8x1xf32>
    %157 = vector.broadcast %156 : vector<1x8x1xf32> to vector<1x8x8xf32>
    %158 = arith.subf %154, %157 : vector<1x8x8xf32>
    %159 = math.exp %158 : vector<1x8x8xf32>
    %cst_51 = arith.constant dense<0.000000e+00> : vector<1x8xf32>
    %160 = vector.multi_reduction <add>, %159, %cst_51 [2] : vector<1x8x8xf32> to vector<1x8xf32>
    %161 = vector.shape_cast %160 : vector<1x8xf32> to vector<1x8x1xf32>
    %162 = arith.truncf %159 : vector<1x8x8xf32> to vector<1x8x8xbf16>
    "tpu.trace_start"() <{level = 10 : i32, message = "bqk,bkd->bqd"}> : () -> ()
    %cst_52 = arith.constant dense<0.000000e+00> : vector<1x8x128xf32>
    %163 = tpu.matmul %162, %153, %cst_52 {dimension_numbers = #tpu.dot_dimension_numbers<[2], [1], [1], [2], [0, 0, 0, 1, 1, 2], [0], [0]>} : vector<1x8x8xbf16>, vector<1x8x128xbf16>, vector<1x8x128xf32> -> vector<1x8x128xf32>
    "tpu.trace_stop"() : () -> ()
    %164 = tpu.reciprocal %161 {approx = true} : vector<1x8x1xf32> -> vector<1x8x1xf32>
    %cst_53 = arith.constant 0.176776692 : f32
    %165 = vector.broadcast %cst_53 : f32 to vector<1x8x1xf32>
    %166 = arith.mulf %164, %165 : vector<1x8x1xf32>
    %167 = vector.broadcast %166 : vector<1x8x1xf32> to vector<1x8x128xf32>
    %168 = arith.mulf %163, %167 : vector<1x8x128xf32>
    %169 = arith.truncf %168 : vector<1x8x128xf32> to vector<1x8x128xbf16>
    %c0_54 = arith.constant 0 : index
    %c0_55 = arith.constant 0 : index
    %c768 = arith.constant 768 : index
    %170 = vector.load %arg7[%c0_54, %c0_55, %c768] : memref<1x8x1024xbf16, #tpu.memory_space<vmem>>, vector<1x8x128xbf16>
    tpu.vector_store %arg7[%c0_54, %c0_55, %c768], %169 {strides = array<i32>} : memref<1x8x1024xbf16, #tpu.memory_space<vmem>>, vector<1x8x128xbf16>,
    %171 = vector.extract_strided_slice %9 {offsets = [0, 0, 896], sizes = [1, 8, 128], strides = [1, 1, 1]} : vector<1x8x3072xf32> to vector<1x8x128xf32>
    %172 = arith.truncf %171 : vector<1x8x128xf32> to vector<1x8x128xbf16>
    %173 = vector.extract_strided_slice %9 {offsets = [0, 0, 1920], sizes = [1, 8, 128], strides = [1, 1, 1]} : vector<1x8x3072xf32> to vector<1x8x128xf32>
    %174 = arith.truncf %173 : vector<1x8x128xf32> to vector<1x8x128xbf16>
    %175 = vector.extract_strided_slice %9 {offsets = [0, 0, 2944], sizes = [1, 8, 128], strides = [1, 1, 1]} : vector<1x8x3072xf32> to vector<1x8x128xf32>
    %176 = arith.truncf %175 : vector<1x8x128xf32> to vector<1x8x128xbf16>
    "tpu.trace_start"() <{level = 10 : i32, message = "bqd,bkd->bqk"}> : () -> ()
    %cst_56 = arith.constant dense<0.000000e+00> : vector<1x8x8xf32>
    %177 = tpu.matmul %172, %174, %cst_56 {dimension_numbers = #tpu.dot_dimension_numbers<[2], [2], [1], [1], [0, 0, 0, 1, 1, 1], [0], [0]>} : vector<1x8x128xbf16>, vector<1x8x128xbf16>, vector<1x8x8xf32> -> vector<1x8x8xf32>
    "tpu.trace_stop"() : () -> ()
    %cst_57 = arith.constant dense<0xFF800000> : vector<1x8xf32>
    %178 = vector.multi_reduction <maximumf>, %177, %cst_57 [2] : vector<1x8x8xf32> to vector<1x8xf32>
    %179 = vector.shape_cast %178 : vector<1x8xf32> to vector<1x8x1xf32>
    %180 = vector.broadcast %179 : vector<1x8x1xf32> to vector<1x8x8xf32>
    %181 = arith.subf %177, %180 : vector<1x8x8xf32>
    %182 = math.exp %181 : vector<1x8x8xf32>
    %cst_58 = arith.constant dense<0.000000e+00> : vector<1x8xf32>
    %183 = vector.multi_reduction <add>, %182, %cst_58 [2] : vector<1x8x8xf32> to vector<1x8xf32>
    %184 = vector.shape_cast %183 : vector<1x8xf32> to vector<1x8x1xf32>
    %185 = arith.truncf %182 : vector<1x8x8xf32> to vector<1x8x8xbf16>
    "tpu.trace_start"() <{level = 10 : i32, message = "bqk,bkd->bqd"}> : () -> ()
    %cst_59 = arith.constant dense<0.000000e+00> : vector<1x8x128xf32>
    %186 = tpu.matmul %185, %176, %cst_59 {dimension_numbers = #tpu.dot_dimension_numbers<[2], [1], [1], [2], [0, 0, 0, 1, 1, 2], [0], [0]>} : vector<1x8x8xbf16>, vector<1x8x128xbf16>, vector<1x8x128xf32> -> vector<1x8x128xf32>
    "tpu.trace_stop"() : () -> ()
    %187 = tpu.reciprocal %184 {approx = true} : vector<1x8x1xf32> -> vector<1x8x1xf32>
    %cst_60 = arith.constant 0.176776692 : f32
    %188 = vector.broadcast %cst_60 : f32 to vector<1x8x1xf32>
    %189 = arith.mulf %187, %188 : vector<1x8x1xf32>
    %190 = vector.broadcast %189 : vector<1x8x1xf32> to vector<1x8x128xf32>
    %191 = arith.mulf %186, %190 : vector<1x8x128xf32>
    %192 = arith.truncf %191 : vector<1x8x128xf32> to vector<1x8x128xbf16>
    %c0_61 = arith.constant 0 : index
    %c0_62 = arith.constant 0 : index
    %c896 = arith.constant 896 : index
    %193 = vector.load %arg7[%c0_61, %c0_62, %c896] : memref<1x8x1024xbf16, #tpu.memory_space<vmem>>, vector<1x8x128xbf16>
    tpu.vector_store %arg7[%c0_61, %c0_62, %c896], %192 {strides = array<i32>} : memref<1x8x1024xbf16, #tpu.memory_space<vmem>>, vector<1x8x128xbf16>,
    %c0_63 = arith.constant 0 : index
    %c0_64 = arith.constant 0 : index
    %c0_65 = arith.constant 0 : index
    %194 = vector.load %arg7[%c0_63, %c0_64, %c0_65] : memref<1x8x1024xbf16, #tpu.memory_space<vmem>>, vector<1x8x1024xbf16>
    %195 = vector.shape_cast %194 : vector<1x8x1024xbf16> to vector<8x1024xbf16>
    %c0_66 = arith.constant 0 : index
    %c0_67 = arith.constant 0 : index
    %196 = vector.load %arg3[%c0_66, %c0_67] : memref<1024x32xbf16, #tpu.memory_space<vmem>>, vector<1024x32xbf16>
    %cst_68 = arith.constant dense<0.000000e+00> : vector<8x32xf32>
    %197 = tpu.matmul %195, %196, %cst_68 {dimension_numbers = #tpu.dot_dimension_numbers<[1], [0], [0], [1], [0, 0, 1, 1], [], []>} : vector<8x1024xbf16>, vector<1024x32xbf16>, vector<8x32xf32> -> vector<8x32xf32>
    %c0_69 = arith.constant 0 : index
    %c0_70 = arith.constant 0 : index
    %198 = vector.load %arg5[%c0_69, %c0_70] : memref<1x32xf32, #tpu.memory_space<vmem>>, vector<1x32xf32>
    %199 = vector.shape_cast %198 : vector<1x32xf32> to vector<32xf32>
    %200 = vector.shape_cast %199 : vector<32xf32> to vector<1x32xf32>
    %201 = vector.broadcast %200 : vector<1x32xf32> to vector<8x32xf32>
    %202 = arith.addf %197, %201 : vector<8x32xf32>
    %203 = vector.shape_cast %202 : vector<8x32xf32> to vector<1x8x32xf32>
    %c0_71 = arith.constant 0 : index
    %c0_72 = arith.constant 0 : index
    %c0_73 = arith.constant 0 : index
    %204 = vector.load %arg6[%c0_71, %c0_72, %c0_73] : memref<1x8x32xf32, #tpu.memory_space<vmem>>, vector<1x8x32xf32>
    tpu.vector_store %arg6[%c0_71, %c0_72, %c0_73], %203 {strides = array<i32>} : memref<1x8x32xf32, #tpu.memory_space<vmem>>, vector<1x8x32xf32>,
    return
  }
  func.func @transform_0(%arg0: i32) -> (i32, i32, i32) {
    %c0_i32 = arith.constant 0 : i32
    %c0_i32_0 = arith.constant 0 : i32
    %c0_i32_1 = arith.constant 0 : i32
    return %arg0, %c0_i32, %c0_i32_0 : i32, i32, i32
  }
  func.func @transform_1(%arg0: i32) -> (i32, i32) {
    %c0_i32 = arith.constant 0 : i32
    %c0_i32_0 = arith.constant 0 : i32
    %c0_i32_1 = arith.constant 0 : i32
    return %c0_i32, %c0_i32_0 : i32, i32
  }
  func.func @transform_2(%arg0: i32) -> (i32, i32) {
    %c0_i32 = arith.constant 0 : i32
    %c0_i32_0 = arith.constant 0 : i32
    %c0_i32_1 = arith.constant 0 : i32
    return %c0_i32, %c0_i32_0 : i32, i32
  }
  func.func @transform_3(%arg0: i32) -> (i32, i32) {
    %c0_i32 = arith.constant 0 : i32
    %c0_i32_0 = arith.constant 0 : i32
    %c0_i32_1 = arith.constant 0 : i32
    return %c0_i32, %c0_i32_0 : i32, i32
  }
  func.func @transform_4(%arg0: i32) -> (i32, i32) {
    %c0_i32 = arith.constant 0 : i32
    %c0_i32_0 = arith.constant 0 : i32
    %c0_i32_1 = arith.constant 0 : i32
    return %c0_i32, %c0_i32_0 : i32, i32
  }
  func.func @transform_5(%arg0: i32) -> (i32, i32, i32) {
    %c0_i32 = arith.constant 0 : i32
    %c0_i32_0 = arith.constant 0 : i32
    %c0_i32_1 = arith.constant 0 : i32
    return %arg0, %c0_i32, %c0_i32_0 : i32, i32, i32
  }
}

</mosaic_0001>

<llo_original>
// kernel: tpu_custom_call.1
$region0: #{tpu_custom_call.1}
  #allocation0 [shape = 'u32[]', space=smem, size = 0x4, offset = 0x4, fixed_abs, tag = 'smem constant byte address 0x4 - core index']
  #allocation1 [shape = 'u32[144,128]{1,0:T(1,128)}', space=vmem, size = 0x12000, scoped, tag = 'internal scratch']
  #allocation2 [shape = 'bf16[1,8,1024]{2,1,0:T(8,128)(2,1)}', space=vmem, size = 0x4000, scoped, tag = 'scratch operand']
  %s0 = inlined_call_operand.vmem [shape: bf16[2,8,32], index: 0, kind: input, shape index: {}]
  %s1 = inlined_call_operand.vmem [shape: bf16[32,3072], index: 1, kind: input, shape index: {}]
  %s2 = inlined_call_operand.vmem [shape: bf16[1024,32], index: 2, kind: input, shape index: {}]
  %s3 = inlined_call_operand.vmem [shape: f32[1,3072], index: 3, kind: input, shape index: {}]
  %s4 = inlined_call_operand.vmem [shape: f32[1,32], index: 4, kind: input, shape index: {}]
  %s5 = inlined_call_operand.hbm [shape: f32[2,8,32], index: 5, kind: output, shape index: {}]
  %s6 = sld [smem:[#allocation0]]
  $region53: #{tpu_custom_call.1} parent=0
    _
  %s8 = ssub.s32 1, %s6
  %s9 = scalar_select 0, %s8, %s6
  $region1: #{tpu_custom_call.1} parent=0
    #allocation3 [shape = 'u8[8192]{0}', space=vmem, size = 0x2000, scoped, tag = 'output window, operand 0']
    #allocation4 [shape = 's32[2]{0}', space=sflag, size = 0x8, scoped, tag = 'scoped memory for tpu_custom_call.1']
    %10 = vsyncpa [#allocation4], 0
    %s11 = scalar_lea.sflag [#allocation4], 1
    %12 = vsyncpa %s11, 0
    loop: start=0, step=1, limit=4
    $region2: #{tpu_custom_call.1} parent=1 // loop_pre_header
      _
    $region3: #{tpu_custom_call.1} parent=1 // loop_header
      %s14 = sphi 0, %s18
      %p15 = scmp.ge.s32.totalorder %s14, 4
      %s24 = sphi 0, %s26
      %s27 = sphi 0, %s24
      %s28 = sphi 0, %s27
      %s44 = sphi 0, %s28
      %s48 = sphi 0, %s48
      %s50 = sphi 0, %s48
      %s51 = sphi 0, %s50
      %s65 = sphi 0, %s51
      %s69 = sphi 0, %s69
      %s71 = sphi 0, %s69
      %s72 = sphi 0, %s71
      %s86 = sphi 0, %s72
      %s90 = sphi 0, %s90
      %s92 = sphi 0, %s90
      %s93 = sphi 0, %s92
      %s107 = sphi 0, %s93
      %s111 = sphi 0, %s111
      %s113 = sphi 0, %s111
      %s114 = sphi 0, %s113
      %s128 = sphi 0, %s114
      %s134 = sphi 0, %s136
      %s137 = sphi 0, %s134
      %s138 = sphi 0, %s137
      %s154 = sphi 0, %s138
    $region4: #{tpu_custom_call.1} parent=1 // loop_header_branch
      %17 = sbr.rel (%p15) target = $region8
    $region5: #{tpu_custom_call.1} parent=1 // loop_body
      %s19 = ssub.s32 %s14, 1
      %s20 = ssub.s32 %s14, 2
      %s21 = sadd.s32 %s14, 1
      %s22 = ssub.s32 %s14, %s21
      %p23 = scmp.eq.s32.totalorder %s22, 0
      %s25 = sadd.s32 %s24, 1
      %s26 = scalar_select %p23, %s24, %s25
      %p29 = pneg %p23
      %p30 = scmp.eq.s32.totalorder %s14, 1
      %p31 = por %p29, %p30
      %p32 = scmp.ne.s32.totalorder %s24, %s27
      %p33 = scmp.eq.s32.totalorder %s14, 0
      %p34 = por %p32, %p33
      %p35 = scmp.ne.s32.totalorder %s24, %s27
      %p36 = scmp.eq.s32.totalorder %s19, 1
      %p37 = por %p35, %p36
      %p38 = scmp.ne.s32.totalorder %s27, %s28
      %p39 = scmp.eq.s32.totalorder %s19, 0
      %p40 = por %p38, %p39
      %p41 = scmp.ne.s32.totalorder %s27, %s28
      %p42 = scmp.eq.s32.totalorder %s20, 1
      %p43 = por %p41, %p42
      %p45 = scmp.ne.s32.totalorder %s28, %s44
      %p46 = scmp.eq.s32.totalorder %s20, 0
      %p47 = por %p45, %p46
      %s49 = sadd.s32 %s48, 1
      %p52 = scmp.eq.s32.totalorder %s14, 1
      %p53 = scmp.ne.s32.totalorder %s48, %s50
      %p54 = scmp.eq.s32.totalorder %s14, 0
      %p55 = por %p53, %p54
      %p56 = scmp.ne.s32.totalorder %s48, %s50
      %p57 = scmp.eq.s32.totalorder %s19, 1
      %p58 = por %p56, %p57
      %p59 = scmp.ne.s32.totalorder %s50, %s51
      %p60 = scmp.eq.s32.totalorder %s19, 0
      %p61 = por %p59, %p60
      %p62 = scmp.ne.s32.totalorder %s50, %s51
      %p63 = scmp.eq.s32.totalorder %s20, 1
      %p64 = por %p62, %p63
      %p66 = scmp.ne.s32.totalorder %s51, %s65
      %p67 = scmp.eq.s32.totalorder %s20, 0
      %p68 = por %p66, %p67
      %s70 = sadd.s32 %s69, 1
      %p73 = scmp.eq.s32.totalorder %s14, 1
      %p74 = scmp.ne.s32.totalorder %s69, %s71
      %p75 = scmp.eq.s32.totalorder %s14, 0
      %p76 = por %p74, %p75
      %p77 = scmp.ne.s32.totalorder %s69, %s71
      %p78 = scmp.eq.s32.totalorder %s19, 1
      %p79 = por %p77, %p78
      %p80 = scmp.ne.s32.totalorder %s71, %s72
      %p81 = scmp.eq.s32.totalorder %s19, 0
      %p82 = por %p80, %p81
      %p83 = scmp.ne.s32.totalorder %s71, %s72
      %p84 = scmp.eq.s32.totalorder %s20, 1
      %p85 = por %p83, %p84
      %p87 = scmp.ne.s32.totalorder %s72, %s86
      %p88 = scmp.eq.s32.totalorder %s20, 0
      %p89 = por %p87, %p88
      %s91 = sadd.s32 %s90, 1
      %p94 = scmp.eq.s32.totalorder %s14, 1
      %p95 = scmp.ne.s32.totalorder %s90, %s92
      %p96 = scmp.eq.s32.totalorder %s14, 0
      %p97 = por %p95, %p96
      %p98 = scmp.ne.s32.totalorder %s90, %s92
      %p99 = scmp.eq.s32.totalorder %s19, 1
      %p100 = por %p98, %p99
      %p101 = scmp.ne.s32.totalorder %s92, %s93
      %p102 = scmp.eq.s32.totalorder %s19, 0
      %p103 = por %p101, %p102
      %p104 = scmp.ne.s32.totalorder %s92, %s93
      %p105 = scmp.eq.s32.totalorder %s20, 1
      %p106 = por %p104, %p105
      %p108 = scmp.ne.s32.totalorder %s93, %s107
      %p109 = scmp.eq.s32.totalorder %s20, 0
      %p110 = por %p108, %p109
      %s112 = sadd.s32 %s111, 1
      %p115 = scmp.eq.s32.totalorder %s14, 1
      %p116 = scmp.ne.s32.totalorder %s111, %s113
      %p117 = scmp.eq.s32.totalorder %s14, 0
      %p118 = por %p116, %p117
      %p119 = scmp.ne.s32.totalorder %s111, %s113
      %p120 = scmp.eq.s32.totalorder %s19, 1
      %p121 = por %p119, %p120
      %p122 = scmp.ne.s32.totalorder %s113, %s114
      %p123 = scmp.eq.s32.totalorder %s19, 0
      %p124 = por %p122, %p123
      %p125 = scmp.ne.s32.totalorder %s113, %s114
      %p126 = scmp.eq.s32.totalorder %s20, 1
      %p127 = por %p125, %p126
      %p129 = scmp.ne.s32.totalorder %s114, %s128
      %p130 = scmp.eq.s32.totalorder %s20, 0
      %p131 = por %p129, %p130
      %s132 = ssub.s32 %s14, %s21
      %p133 = scmp.eq.s32.totalorder %s132, 0
      %s135 = sadd.s32 %s134, 1
      %s136 = scalar_select %p133, %s134, %s135
      %p139 = pneg %p133
      %p140 = scmp.eq.s32.totalorder %s14, 1
      %p141 = por %p139, %p140
      %p142 = scmp.ne.s32.totalorder %s134, %s137
      %p143 = scmp.eq.s32.totalorder %s14, 0
      %p144 = por %p142, %p143
      %p145 = scmp.ne.s32.totalorder %s134, %s137
      %p146 = scmp.eq.s32.totalorder %s19, 1
      %p147 = por %p145, %p146
      %p148 = scmp.ne.s32.totalorder %s137, %s138
      %p149 = scmp.eq.s32.totalorder %s19, 0
      %p150 = por %p148, %p149
      %p151 = scmp.ne.s32.totalorder %s137, %s138
      %p152 = scmp.eq.s32.totalorder %s20, 1
      %p153 = por %p151, %p152
      %p155 = scmp.ne.s32.totalorder %s138, %s154
      %p156 = scmp.eq.s32.totalorder %s20, 0
      %p157 = por %p155, %p156
      %p158 = scmp.le.s32.totalorder 1, %s14
      %p159 = scmp.lt.s32.totalorder %s14, 3
      %p160 = pnand %p158, %p159
      %p161 = pneg %p160
      // Predicated region
      $region9: #{tpu_custom_call.1} parent=5 // pred_check
        _
      $region10: #{tpu_custom_call.1} parent=5 // pred_check_branch
        %163 = sbr.rel (%p160) target = $region12
      $region11: #{tpu_custom_call.1} parent=5 // pred_region
        %s164 = ssub.s32 %s14, 1
        // Predicated region
        $region13: #{tpu_custom_call.1} parent=11 // pred_check
          %p165 = pneg %p61
        $region14: #{tpu_custom_call.1} parent=11 // pred_check_branch
          %167 = sbr.rel (%p165) target = $region16
        $region15: #{tpu_custom_call.1} parent=11 // pred_region
          _
        $region16: #{tpu_custom_call.1} parent=11 // pred_fallthru
          _
        // Predicated region
        $region17: #{tpu_custom_call.1} parent=11 // pred_check
          %p168 = pneg %p82
        $region18: #{tpu_custom_call.1} parent=11 // pred_check_branch
          %170 = sbr.rel (%p168) target = $region20
        $region19: #{tpu_custom_call.1} parent=11 // pred_region
          _
        $region20: #{tpu_custom_call.1} parent=11 // pred_fallthru
          _
        // Predicated region
        $region21: #{tpu_custom_call.1} parent=11 // pred_check
          %p171 = pneg %p103
        $region22: #{tpu_custom_call.1} parent=11 // pred_check_branch
          %173 = sbr.rel (%p171) target = $region24
        $region23: #{tpu_custom_call.1} parent=11 // pred_region
          _
        $region24: #{tpu_custom_call.1} parent=11 // pred_fallthru
          _
        // Predicated region
        $region25: #{tpu_custom_call.1} parent=11 // pred_check
          %p174 = pneg %p124
        $region26: #{tpu_custom_call.1} parent=11 // pred_check_branch
          %176 = sbr.rel (%p174) target = $region28
        $region27: #{tpu_custom_call.1} parent=11 // pred_region
          _
        $region28: #{tpu_custom_call.1} parent=11 // pred_fallthru
          _
      $region12: #{tpu_custom_call.1} parent=5 // pred_fallthru
        _
      %p177 = scmp.lt.s32.totalorder %s14, 2
      // Predicated region
      $region29: #{tpu_custom_call.1} parent=5 // pred_check
        %p178 = pneg %p177
      $region30: #{tpu_custom_call.1} parent=5 // pred_check_branch
        %180 = sbr.rel (%p178) target = $region32
      $region31: #{tpu_custom_call.1} parent=5 // pred_region
        // Predicated region
        $region33: #{tpu_custom_call.1} parent=31 // pred_check
          %p181 = pneg %p34
        $region34: #{tpu_custom_call.1} parent=31 // pred_check_branch
          %183 = sbr.rel (%p181) target = $region36
        $region35: #{tpu_custom_call.1} parent=31 // pred_region
          %p184 = scmp.lt.s32.totalorder %s14, 1
          %s185 = scalar_select %p184, %s14, 1
          %s186 = smul.addr %s185, 4
          %s187 = scalar_lea.vmem %s0, %s186
        $region36: #{tpu_custom_call.1} parent=31 // pred_fallthru
          _
      $region32: #{tpu_custom_call.1} parent=5 // pred_fallthru
        _
      %p188 = scmp.le.s32.totalorder 1, %s14
      %p189 = scmp.lt.s32.totalorder %s14, 3
      %p190 = pnand %p188, %p189
      %p191 = pneg %p190
      // Predicated region
      $region37: #{tpu_custom_call.1} parent=5 // pred_check
        _
      $region38: #{tpu_custom_call.1} parent=5 // pred_check_branch
        %193 = sbr.rel (%p190) target = $region40
      $region39: #{tpu_custom_call.1} parent=5 // pred_region
        %s194 = ssub.s32 %s14, 1
        %p195 = scmp.lt.s32.totalorder %s19, 1
        %s196 = scalar_select %p195, %s19, 1
        %s197 = smul.addr %s196, 4
        %s198 = scalar_lea.vmem %s0, %s197
        %p199 = pneg %p40
        %p200 = pneg %p37
        %p201 = pneg %p61
        %p202 = pneg %p58
        %p203 = pneg %p82
        %p204 = pneg %p79
        %p205 = pneg %p103
        %p206 = pneg %p100
        %p207 = pneg %p124
        %p208 = pneg %p121
        %p209 = pneg %p150
        %p210 = pneg %p147
        %s211 = sand.u32 %s137, 1
        %s212 = scalar_lea.sflag [#allocation4], %s211
        %s213 = sand.u32 %s137, 1
        %s214 = smul.addr %s213, 8
        %s215 = scalar_lea.vmem [#allocation3], %s214
        %p216 = scmp.lt.s32.totalorder %s19, 1
        %s217 = scalar_select %p216, %s19, 1
        %s218 = smul.addr %s217, 4
        %s219 = scalar_lea.vmem %s0, %s218
        %v221 = vld [vmem:[%s219] sm:$0xf]
        %v222 = vld [vmem:[%s1] sm:$0xff]
        %v223 = vld [vmem:[%s1 + $0x8] sm:$0xff]
        %v224 = vld [vmem:[%s1 + $0x10] sm:$0xff]
        %v225 = vld [vmem:[%s1 + $0x18] sm:$0xff]
        %v226 = vld [vmem:[%s1 + $0x20] sm:$0xff]
        %v227 = vld [vmem:[%s1 + $0x28] sm:$0xff]
        %v228 = vld [vmem:[%s1 + $0x30] sm:$0xff]
        %v229 = vld [vmem:[%s1 + $0x38] sm:$0xff]
        %v230 = vld [vmem:[%s1 + $0x40] sm:$0xff]
        %v231 = vld [vmem:[%s1 + $0x48] sm:$0xff]
        %v232 = vld [vmem:[%s1 + $0x50] sm:$0xff]
        %v233 = vld [vmem:[%s1 + $0x58] sm:$0xff]
        %v234 = vld [vmem:[%s1 + $0x60] sm:$0xff]
        %v235 = vld [vmem:[%s1 + $0x68] sm:$0xff]
        %v236 = vld [vmem:[%s1 + $0x70] sm:$0xff]
        %v237 = vld [vmem:[%s1 + $0x78] sm:$0xff]
        %v238 = vld [vmem:[%s1 + $0x80] sm:$0xff]
        %v239 = vld [vmem:[%s1 + $0x88] sm:$0xff]
        %v240 = vld [vmem:[%s1 + $0x90] sm:$0xff]
        %v241 = vld [vmem:[%s1 + $0x98] sm:$0xff]
        %v242 = vld [vmem:[%s1 + $0xa0] sm:$0xff]
        %v243 = vld [vmem:[%s1 + $0xa8] sm:$0xff]
        %v244 = vld [vmem:[%s1 + $0xb0] sm:$0xff]
        %v245 = vld [vmem:[%s1 + $0xb8] sm:$0xff]
        %v246 = vld [vmem:[%s1 + $0xc0] sm:$0xff]
        %v247 = vld [vmem:[%s1 + $0xc8] sm:$0xff]
        %v248 = vld [vmem:[%s1 + $0xd0] sm:$0xff]
        %v249 = vld [vmem:[%s1 + $0xd8] sm:$0xff]
        %v250 = vld [vmem:[%s1 + $0xe0] sm:$0xff]
        %v251 = vld [vmem:[%s1 + $0xe8] sm:$0xff]
        %v252 = vld [vmem:[%s1 + $0xf0] sm:$0xff]
        %v253 = vld [vmem:[%s1 + $0xf8] sm:$0xff]
        %v254 = vld [vmem:[%s1 + $0x100] sm:$0xff]
        %v255 = vld [vmem:[%s1 + $0x108] sm:$0xff]
        %v256 = vld [vmem:[%s1 + $0x110] sm:$0xff]
        %v257 = vld [vmem:[%s1 + $0x118] sm:$0xff]
        %v258 = vld [vmem:[%s1 + $0x120] sm:$0xff]
        %v259 = vld [vmem:[%s1 + $0x128] sm:$0xff]
        %v260 = vld [vmem:[%s1 + $0x130] sm:$0xff]
        %v261 = vld [vmem:[%s1 + $0x138] sm:$0xff]
        %v262 = vld [vmem:[%s1 + $0x140] sm:$0xff]
        %v263 = vld [vmem:[%s1 + $0x148] sm:$0xff]
        %v264 = vld [vmem:[%s1 + $0x150] sm:$0xff]
        %v265 = vld [vmem:[%s1 + $0x158] sm:$0xff]
        %v266 = vld [vmem:[%s1 + $0x160] sm:$0xff]
        %v267 = vld [vmem:[%s1 + $0x168] sm:$0xff]
        %v268 = vld [vmem:[%s1 + $0x170] sm:$0xff]
        %v269 = vld [vmem:[%s1 + $0x178] sm:$0xff]
        %v270 = vld [vmem:[%s3] sm:$0xff]
        %v271 = vld [vmem:[%s3 + $0x8] sm:$0xff]
        %v272 = vld [vmem:[%s3 + $0x10] sm:$0xff]
        %v276 = vlaneseq
        %v277 = vshrl.u32 %v276, 7
        %v278 = vsub.s32 0, %v277
        %v279 = vrot.slane %v270, %v278
        %v280 = vlaneseq
        %v281 = vshrl.u32 %v280, 7
        %v282 = vsub.s32 1, %v281
        %v283 = vrot.slane %v270, %v282
        %v284 = vlaneseq
        %v285 = vshrl.u32 %v284, 7
        %v286 = vsub.s32 2, %v285
        %v287 = vrot.slane %v270, %v286
        %v288 = vlaneseq
        %v289 = vshrl.u32 %v288, 7
        %v290 = vsub.s32 3, %v289
        %v291 = vrot.slane %v270, %v290
        %v292 = vlaneseq
        %v293 = vshrl.u32 %v292, 7
        %v294 = vsub.s32 4, %v293
        %v295 = vrot.slane %v270, %v294
        %v296 = vlaneseq
        %v297 = vshrl.u32 %v296, 7
        %v298 = vsub.s32 5, %v297
        %v299 = vrot.slane %v270, %v298
        %v300 = vlaneseq
        %v301 = vshrl.u32 %v300, 7
        %v302 = vsub.s32 6, %v301
        %v303 = vrot.slane %v270, %v302
        %v304 = vlaneseq
        %v305 = vshrl.u32 %v304, 7
        %v306 = vsub.s32 7, %v305
        %v307 = vrot.slane %v270, %v306
        %v308 = vlaneseq
        %v309 = vshrl.u32 %v308, 7
        %v310 = vsub.s32 0, %v309
        %v311 = vrot.slane %v271, %v310
        %v312 = vlaneseq
        %v313 = vshrl.u32 %v312, 7
        %v314 = vsub.s32 1, %v313
        %v315 = vrot.slane %v271, %v314
        %v316 = vlaneseq
        %v317 = vshrl.u32 %v316, 7
        %v318 = vsub.s32 2, %v317
        %v319 = vrot.slane %v271, %v318
        %v320 = vlaneseq
        %v321 = vshrl.u32 %v320, 7
        %v322 = vsub.s32 3, %v321
        %v323 = vrot.slane %v271, %v322
        %v324 = vlaneseq
        %v325 = vshrl.u32 %v324, 7
        %v326 = vsub.s32 4, %v325
        %v327 = vrot.slane %v271, %v326
        %v328 = vlaneseq
        %v329 = vshrl.u32 %v328, 7
        %v330 = vsub.s32 5, %v329
        %v331 = vrot.slane %v271, %v330
        %v332 = vlaneseq
        %v333 = vshrl.u32 %v332, 7
        %v334 = vsub.s32 6, %v333
        %v335 = vrot.slane %v271, %v334
        %v336 = vlaneseq
        %v337 = vshrl.u32 %v336, 7
        %v338 = vsub.s32 7, %v337
        %v339 = vrot.slane %v271, %v338
        %v340 = vlaneseq
        %v341 = vshrl.u32 %v340, 7
        %v342 = vsub.s32 0, %v341
        %v343 = vrot.slane %v272, %v342
        %v344 = vlaneseq
        %v345 = vshrl.u32 %v344, 7
        %v346 = vsub.s32 1, %v345
        %v347 = vrot.slane %v272, %v346
        %v348 = vlaneseq
        %v349 = vshrl.u32 %v348, 7
        %v350 = vsub.s32 2, %v349
        %v351 = vrot.slane %v272, %v350
        %v352 = vlaneseq
        %v353 = vshrl.u32 %v352, 7
        %v354 = vsub.s32 3, %v353
        %v355 = vrot.slane %v272, %v354
        %v356 = vlaneseq
        %v357 = vshrl.u32 %v356, 7
        %v358 = vsub.s32 4, %v357
        %v359 = vrot.slane %v272, %v358
        %v360 = vlaneseq
        %v361 = vshrl.u32 %v360, 7
        %v362 = vsub.s32 5, %v361
        %v363 = vrot.slane %v272, %v362
        %v364 = vlaneseq
        %v365 = vshrl.u32 %v364, 7
        %v366 = vsub.s32 6, %v365
        %v367 = vrot.slane %v272, %v366
        %v368 = vlaneseq
        %v369 = vshrl.u32 %v368, 7
        %v370 = vsub.s32 7, %v369
        %v371 = vrot.slane %v272, %v370
        %v444 = vunpack.c.l.b16 %v222
        %v445 = vunpack.c.h.b16 %v222
        %v446 = vunpack.c.l.b16 %v223
        %v447 = vunpack.c.h.b16 %v223
        %v448 = vunpack.c.l.b16 %v224
        %v449 = vunpack.c.h.b16 %v224
        %v450 = vunpack.c.l.b16 %v225
        %v451 = vunpack.c.h.b16 %v225
        %v452 = vunpack.c.l.b16 %v226
        %v453 = vunpack.c.h.b16 %v226
        %v454 = vunpack.c.l.b16 %v227
        %v455 = vunpack.c.h.b16 %v227
        %v456 = vunpack.c.l.b16 %v228
        %v457 = vunpack.c.h.b16 %v228
        %v458 = vunpack.c.l.b16 %v229
        %v459 = vunpack.c.h.b16 %v229
        %v460 = vunpack.c.l.b16 %v230
        %v461 = vunpack.c.h.b16 %v230
        %v462 = vunpack.c.l.b16 %v231
        %v463 = vunpack.c.h.b16 %v231
        %v464 = vunpack.c.l.b16 %v232
        %v465 = vunpack.c.h.b16 %v232
        %v466 = vunpack.c.l.b16 %v233
        %v467 = vunpack.c.h.b16 %v233
        %v468 = vunpack.c.l.b16 %v234
        %v469 = vunpack.c.h.b16 %v234
        %v470 = vunpack.c.l.b16 %v235
        %v471 = vunpack.c.h.b16 %v235
        %v472 = vunpack.c.l.b16 %v236
        %v473 = vunpack.c.h.b16 %v236
        %v474 = vunpack.c.l.b16 %v237
        %v475 = vunpack.c.h.b16 %v237
        %v476 = vunpack.c.l.b16 %v238
        %v477 = vunpack.c.h.b16 %v238
        %v478 = vunpack.c.l.b16 %v239
        %v479 = vunpack.c.h.b16 %v239
        %v480 = vunpack.c.l.b16 %v240
        %v481 = vunpack.c.h.b16 %v240
        %v482 = vunpack.c.l.b16 %v241
        %v483 = vunpack.c.h.b16 %v241
        %v484 = vunpack.c.l.b16 %v242
        %v485 = vunpack.c.h.b16 %v242
        %v486 = vunpack.c.l.b16 %v243
        %v487 = vunpack.c.h.b16 %v243
        %v488 = vunpack.c.l.b16 %v244
        %v489 = vunpack.c.h.b16 %v244
        %v490 = vunpack.c.l.b16 %v245
        %v491 = vunpack.c.h.b16 %v245
        %v492 = vunpack.c.l.b16 %v246
        %v493 = vunpack.c.h.b16 %v246
        %v494 = vunpack.c.l.b16 %v247
        %v495 = vunpack.c.h.b16 %v247
        %v496 = vunpack.c.l.b16 %v248
        %v497 = vunpack.c.h.b16 %v248
        %v498 = vunpack.c.l.b16 %v249
        %v499 = vunpack.c.h.b16 %v249
        %v500 = vunpack.c.l.b16 %v250
        %v501 = vunpack.c.h.b16 %v250
        %v502 = vunpack.c.l.b16 %v251
        %v503 = vunpack.c.h.b16 %v251
        %v504 = vunpack.c.l.b16 %v252
        %v505 = vunpack.c.h.b16 %v252
        %v506 = vunpack.c.l.b16 %v253
        %v507 = vunpack.c.h.b16 %v253
        %v508 = vunpack.c.l.b16 %v254
        %v509 = vunpack.c.h.b16 %v254
        %v510 = vunpack.c.l.b16 %v255
        %v511 = vunpack.c.h.b16 %v255
        %v512 = vunpack.c.l.b16 %v256
        %v513 = vunpack.c.h.b16 %v256
        %v514 = vunpack.c.l.b16 %v257
        %v515 = vunpack.c.h.b16 %v257
        %v516 = vunpack.c.l.b16 %v258
        %v517 = vunpack.c.h.b16 %v258
        %v518 = vunpack.c.l.b16 %v259
        %v519 = vunpack.c.h.b16 %v259
        %v520 = vunpack.c.l.b16 %v260
        %v521 = vunpack.c.h.b16 %v260
        %v522 = vunpack.c.l.b16 %v261
        %v523 = vunpack.c.h.b16 %v261
        %v524 = vunpack.c.l.b16 %v262
        %v525 = vunpack.c.h.b16 %v262
        %v526 = vunpack.c.l.b16 %v263
        %v527 = vunpack.c.h.b16 %v263
        %v528 = vunpack.c.l.b16 %v264
        %v529 = vunpack.c.h.b16 %v264
        %v530 = vunpack.c.l.b16 %v265
        %v531 = vunpack.c.h.b16 %v265
        %v532 = vunpack.c.l.b16 %v266
        %v533 = vunpack.c.h.b16 %v266
        %v534 = vunpack.c.l.b16 %v267
        %v535 = vunpack.c.h.b16 %v267
        %v536 = vunpack.c.l.b16 %v268
        %v537 = vunpack.c.h.b16 %v268
        %v538 = vunpack.c.l.b16 %v269
        %v539 = vunpack.c.h.b16 %v269
        %v540 = vpack.c.b16 %v468, %v444
        %v541 = vpack.c.b16 %v469, %v445
        %v542 = vpack.c.b16 %v470, %v446
        %v543 = vpack.c.b16 %v471, %v447
        %v544 = vpack.c.b16 %v472, %v448
        %v545 = vpack.c.b16 %v473, %v449
        %v546 = vpack.c.b16 %v474, %v450
        %v547 = vpack.c.b16 %v475, %v451
        %v548 = vpack.c.b16 %v476, %v452
        %v549 = vpack.c.b16 %v477, %v453
        %v550 = vpack.c.b16 %v478, %v454
        %v551 = vpack.c.b16 %v479, %v455
        %v552 = vpack.c.b16 %v480, %v456
        %v553 = vpack.c.b16 %v481, %v457
        %v554 = vpack.c.b16 %v482, %v458
        %v555 = vpack.c.b16 %v483, %v459
        %v556 = vpack.c.b16 %v484, %v460
        %v557 = vpack.c.b16 %v485, %v461
        %v558 = vpack.c.b16 %v486, %v462
        %v559 = vpack.c.b16 %v487, %v463
        %v560 = vpack.c.b16 %v488, %v464
        %v561 = vpack.c.b16 %v489, %v465
        %v562 = vpack.c.b16 %v490, %v466
        %v563 = vpack.c.b16 %v491, %v467
        %v564 = vpack.c.b16 %v516, %v492
        %v565 = vpack.c.b16 %v517, %v493
        %v566 = vpack.c.b16 %v518, %v494
        %v567 = vpack.c.b16 %v519, %v495
        %v568 = vpack.c.b16 %v520, %v496
        %v569 = vpack.c.b16 %v521, %v497
        %v570 = vpack.c.b16 %v522, %v498
        %v571 = vpack.c.b16 %v523, %v499
        %v572 = vpack.c.b16 %v524, %v500
        %v573 = vpack.c.b16 %v525, %v501
        %v574 = vpack.c.b16 %v526, %v502
        %v575 = vpack.c.b16 %v527, %v503
        %v576 = vpack.c.b16 %v528, %v504
        %v577 = vpack.c.b16 %v529, %v505
        %v578 = vpack.c.b16 %v530, %v506
        %v579 = vpack.c.b16 %v531, %v507
        %v580 = vpack.c.b16 %v532, %v508
        %v581 = vpack.c.b16 %v533, %v509
        %v582 = vpack.c.b16 %v534, %v510
        %v583 = vpack.c.b16 %v535, %v511
        %v584 = vpack.c.b16 %v536, %v512
        %v585 = vpack.c.b16 %v537, %v513
        %v586 = vpack.c.b16 %v538, %v514
        %v587 = vpack.c.b16 %v539, %v515
        %vm636 = vcmask 261120
        %v638 = vsel %vm636, %v221, 0
        %640 = vmatprep.subr.bf16.mxu0 0
        %641 = vmatpush1.bf16.msra.mxu0 0
        %642 = vmatprep.subr.bf16.mxu0 0
        %643 = vmatpush1.bf16.msra.mxu0 0
        %644 = vmatprep.subr.bf16.mxu0 0
        %645 = vmatpush1.bf16.msra.mxu0 0
        %646 = vmatprep.subr.bf16.mxu0 0
        %647 = vmatpush1.bf16.msra.mxu0 0
        %648 = vmatprep.subr.bf16.mxu0 0
        %649 = vmatpush1.bf16.msra.mxu0 0
        %650 = vmatprep.subr.bf16.mxu0 0
        %651 = vmatpush1.bf16.msra.mxu0 0
        %652 = vmatprep.subr.bf16.mxu0 %v565
        %653 = vmatpush1.bf16.msra.mxu0 %v564
        %654 = vmatprep.subr.bf16.mxu0 %v541
        %655 = vmatpush1.bf16.msra.mxu0 %v540
        %656 = vmatprep.subr.bf16.mxu0 0
        %657 = vmatpush2.bf16.msra.mxu0 0
        %658 = vmatprep.subr.bf16.mxu0 0
        %659 = vmatpush2.bf16.msra.mxu0 0
        %660 = vmatprep.subr.bf16.mxu0 0
        %661 = vmatpush2.bf16.msra.mxu0 0
        %662 = vmatprep.subr.bf16.mxu0 0
        %663 = vmatpush2.bf16.msra.mxu0 0
        %664 = vmatprep.subr.bf16.mxu0 0
        %665 = vmatpush2.bf16.msra.mxu0 0
        %666 = vmatprep.subr.bf16.mxu0 0
        %667 = vmatpush2.bf16.msra.mxu0 0
        %668 = vmatprep.subr.bf16.mxu0 0
        %669 = vmatpush2.bf16.msra.mxu0 0
        %670 = vmatprep.subr.bf16.mxu0 0
        %671 = vmatpush2.bf16.msra.mxu0 0
        %672 = vmatprep.mubr.bf16.mxu0 0
        %673 = vmatmul.mubr.bf16.gmra.mxu0 %v638
        %v674 = vpop.f32.mrf.mxu0
        %v675 = vadd.f32 %v279, %v674
        %v676 = vpop.f32.mrf.mxu0
        %v677 = vadd.f32 %v283, %v676
        %v678 = vpop.f32.mrf.mxu0
        %v679 = vpop.f32.mrf.mxu0
        %680 = vdwg.mxu0
        %681 = vmatprep.subr.bf16.mxu0 0
        %682 = vmatpush1.bf16.msra.mxu0 0
        %683 = vmatprep.subr.bf16.mxu0 0
        %684 = vmatpush1.bf16.msra.mxu0 0
        %685 = vmatprep.subr.bf16.mxu0 0
        %686 = vmatpush1.bf16.msra.mxu0 0
        %687 = vmatprep.subr.bf16.mxu0 0
        %688 = vmatpush1.bf16.msra.mxu0 0
        %689 = vmatprep.subr.bf16.mxu0 0
        %690 = vmatpush1.bf16.msra.mxu0 0
        %691 = vmatprep.subr.bf16.mxu0 0
        %692 = vmatpush1.bf16.msra.mxu0 0
        %693 = vmatprep.subr.bf16.mxu0 %v567
        %694 = vmatpush1.bf16.msra.mxu0 %v566
        %695 = vmatprep.subr.bf16.mxu0 %v543
        %696 = vmatpush1.bf16.msra.mxu0 %v542
        %697 = vmatprep.subr.bf16.mxu0 0
        %698 = vmatpush2.bf16.msra.mxu0 0
        %699 = vmatprep.subr.bf16.mxu0 0
        %700 = vmatpush2.bf16.msra.mxu0 0
        %701 = vmatprep.subr.bf16.mxu0 0
        %702 = vmatpush2.bf16.msra.mxu0 0
        %703 = vmatprep.subr.bf16.mxu0 0
        %704 = vmatpush2.bf16.msra.mxu0 0
        %705 = vmatprep.subr.bf16.mxu0 0
        %706 = vmatpush2.bf16.msra.mxu0 0
        %707 = vmatprep.subr.bf16.mxu0 0
        %708 = vmatpush2.bf16.msra.mxu0 0
        %709 = vmatprep.subr.bf16.mxu0 0
        %710 = vmatpush2.bf16.msra.mxu0 0
        %711 = vmatprep.subr.bf16.mxu0 0
        %712 = vmatpush2.bf16.msra.mxu0 0
        %713 = vmatprep.mubr.bf16.mxu0 0
        %714 = vmatmul.mubr.bf16.gmra.mxu0 %v638
        %v715 = vpop.f32.mrf.mxu0
        %v716 = vadd.f32 %v287, %v715
        %v717 = vpop.f32.mrf.mxu0
        %v718 = vadd.f32 %v291, %v717
        %v719 = vpop.f32.mrf.mxu0
        %v720 = vpop.f32.mrf.mxu0
        %721 = vdwg.mxu0
        %722 = vmatprep.subr.bf16.mxu0 0
        %723 = vmatpush1.bf16.msra.mxu0 0
        %724 = vmatprep.subr.bf16.mxu0 0
        %725 = vmatpush1.bf16.msra.mxu0 0
        %726 = vmatprep.subr.bf16.mxu0 0
        %727 = vmatpush1.bf16.msra.mxu0 0
        %728 = vmatprep.subr.bf16.mxu0 0
        %729 = vmatpush1.bf16.msra.mxu0 0
        %730 = vmatprep.subr.bf16.mxu0 0
        %731 = vmatpush1.bf16.msra.mxu0 0
        %732 = vmatprep.subr.bf16.mxu0 0
        %733 = vmatpush1.bf16.msra.mxu0 0
        %734 = vmatprep.subr.bf16.mxu0 %v569
        %735 = vmatpush1.bf16.msra.mxu0 %v568
        %736 = vmatprep.subr.bf16.mxu0 %v545
        %737 = vmatpush1.bf16.msra.mxu0 %v544
        %738 = vmatprep.subr.bf16.mxu0 0
        %739 = vmatpush2.bf16.msra.mxu0 0
        %740 = vmatprep.subr.bf16.mxu0 0
        %741 = vmatpush2.bf16.msra.mxu0 0
        %742 = vmatprep.subr.bf16.mxu0 0
        %743 = vmatpush2.bf16.msra.mxu0 0
        %744 = vmatprep.subr.bf16.mxu0 0
        %745 = vmatpush2.bf16.msra.mxu0 0
        %746 = vmatprep.subr.bf16.mxu0 0
        %747 = vmatpush2.bf16.msra.mxu0 0
        %748 = vmatprep.subr.bf16.mxu0 0
        %749 = vmatpush2.bf16.msra.mxu0 0
        %750 = vmatprep.subr.bf16.mxu0 0
        %751 = vmatpush2.bf16.msra.mxu0 0
        %752 = vmatprep.subr.bf16.mxu0 0
        %753 = vmatpush2.bf16.msra.mxu0 0
        %754 = vmatprep.mubr.bf16.mxu0 0
        %755 = vmatmul.mubr.bf16.gmra.mxu0 %v638
        %v756 = vpop.f32.mrf.mxu0
        %v757 = vadd.f32 %v295, %v756
        %v758 = vpop.f32.mrf.mxu0
        %v759 = vadd.f32 %v299, %v758
        %v760 = vpop.f32.mrf.mxu0
        %v761 = vpop.f32.mrf.mxu0
        %762 = vdwg.mxu0
        %763 = vmatprep.subr.bf16.mxu0 0
        %764 = vmatpush1.bf16.msra.mxu0 0
        %765 = vmatprep.subr.bf16.mxu0 0
        %766 = vmatpush1.bf16.msra.mxu0 0
        %767 = vmatprep.subr.bf16.mxu0 0
        %768 = vmatpush1.bf16.msra.mxu0 0
        %769 = vmatprep.subr.bf16.mxu0 0
        %770 = vmatpush1.bf16.msra.mxu0 0
        %771 = vmatprep.subr.bf16.mxu0 0
        %772 = vmatpush1.bf16.msra.mxu0 0
        %773 = vmatprep.subr.bf16.mxu0 0
        %774 = vmatpush1.bf16.msra.mxu0 0
        %775 = vmatprep.subr.bf16.mxu0 %v571
        %776 = vmatpush1.bf16.msra.mxu0 %v570
        %777 = vmatprep.subr.bf16.mxu0 %v547
        %778 = vmatpush1.bf16.msra.mxu0 %v546
        %779 = vmatprep.subr.bf16.mxu0 0
        %780 = vmatpush2.bf16.msra.mxu0 0
        %781 = vmatprep.subr.bf16.mxu0 0
        %782 = vmatpush2.bf16.msra.mxu0 0
        %783 = vmatprep.subr.bf16.mxu0 0
        %784 = vmatpush2.bf16.msra.mxu0 0
        %785 = vmatprep.subr.bf16.mxu0 0
        %786 = vmatpush2.bf16.msra.mxu0 0
        %787 = vmatprep.subr.bf16.mxu0 0
        %788 = vmatpush2.bf16.msra.mxu0 0
        %789 = vmatprep.subr.bf16.mxu0 0
        %790 = vmatpush2.bf16.msra.mxu0 0
        %791 = vmatprep.subr.bf16.mxu0 0
        %792 = vmatpush2.bf16.msra.mxu0 0
        %793 = vmatprep.subr.bf16.mxu0 0
        %794 = vmatpush2.bf16.msra.mxu0 0
        %795 = vmatprep.mubr.bf16.mxu0 0
        %796 = vmatmul.mubr.bf16.gmra.mxu0 %v638
        %v797 = vpop.f32.mrf.mxu0
        %v798 = vadd.f32 %v303, %v797
        %v799 = vpop.f32.mrf.mxu0
        %v800 = vadd.f32 %v307, %v799
        %v801 = vpop.f32.mrf.mxu0
        %v802 = vpop.f32.mrf.mxu0
        %803 = vdwg.mxu0
        %804 = vmatprep.subr.bf16.mxu0 0
        %805 = vmatpush1.bf16.msra.mxu0 0
        %806 = vmatprep.subr.bf16.mxu0 0
        %807 = vmatpush1.bf16.msra.mxu0 0
        %808 = vmatprep.subr.bf16.mxu0 0
        %809 = vmatpush1.bf16.msra.mxu0 0
        %810 = vmatprep.subr.bf16.mxu0 0
        %811 = vmatpush1.bf16.msra.mxu0 0
        %812 = vmatprep.subr.bf16.mxu0 0
        %813 = vmatpush1.bf16.msra.mxu0 0
        %814 = vmatprep.subr.bf16.mxu0 0
        %815 = vmatpush1.bf16.msra.mxu0 0
        %816 = vmatprep.subr.bf16.mxu0 %v573
        %817 = vmatpush1.bf16.msra.mxu0 %v572
        %818 = vmatprep.subr.bf16.mxu0 %v549
        %819 = vmatpush1.bf16.msra.mxu0 %v548
        %820 = vmatprep.subr.bf16.mxu0 0
        %821 = vmatpush2.bf16.msra.mxu0 0
        %822 = vmatprep.subr.bf16.mxu0 0
        %823 = vmatpush2.bf16.msra.mxu0 0
        %824 = vmatprep.subr.bf16.mxu0 0
        %825 = vmatpush2.bf16.msra.mxu0 0
        %826 = vmatprep.subr.bf16.mxu0 0
        %827 = vmatpush2.bf16.msra.mxu0 0
        %828 = vmatprep.subr.bf16.mxu0 0
        %829 = vmatpush2.bf16.msra.mxu0 0
        %830 = vmatprep.subr.bf16.mxu0 0
        %831 = vmatpush2.bf16.msra.mxu0 0
        %832 = vmatprep.subr.bf16.mxu0 0
        %833 = vmatpush2.bf16.msra.mxu0 0
        %834 = vmatprep.subr.bf16.mxu0 0
        %835 = vmatpush2.bf16.msra.mxu0 0
        %836 = vmatprep.mubr.bf16.mxu0 0
        %837 = vmatmul.mubr.bf16.gmra.mxu0 %v638
        %v838 = vpop.f32.mrf.mxu0
        %v839 = vadd.f32 %v311, %v838
        %v840 = vpop.f32.mrf.mxu0
        %v841 = vadd.f32 %v315, %v840
        %v842 = vpop.f32.mrf.mxu0
        %v843 = vpop.f32.mrf.mxu0
        %844 = vdwg.mxu0
        %845 = vmatprep.subr.bf16.mxu0 0
        %846 = vmatpush1.bf16.msra.mxu0 0
        %847 = vmatprep.subr.bf16.mxu0 0
        %848 = vmatpush1.bf16.msra.mxu0 0
        %849 = vmatprep.subr.bf16.mxu0 0
        %850 = vmatpush1.bf16.msra.mxu0 0
        %851 = vmatprep.subr.bf16.mxu0 0
        %852 = vmatpush1.bf16.msra.mxu0 0
        %853 = vmatprep.subr.bf16.mxu0 0
        %854 = vmatpush1.bf16.msra.mxu0 0
        %855 = vmatprep.subr.bf16.mxu0 0
        %856 = vmatpush1.bf16.msra.mxu0 0
        %857 = vmatprep.subr.bf16.mxu0 %v575
        %858 = vmatpush1.bf16.msra.mxu0 %v574
        %859 = vmatprep.subr.bf16.mxu0 %v551
        %860 = vmatpush1.bf16.msra.mxu0 %v550
        %861 = vmatprep.subr.bf16.mxu0 0
        %862 = vmatpush2.bf16.msra.mxu0 0
        %863 = vmatprep.subr.bf16.mxu0 0
        %864 = vmatpush2.bf16.msra.mxu0 0
        %865 = vmatprep.subr.bf16.mxu0 0
        %866 = vmatpush2.bf16.msra.mxu0 0
        %867 = vmatprep.subr.bf16.mxu0 0
        %868 = vmatpush2.bf16.msra.mxu0 0
        %869 = vmatprep.subr.bf16.mxu0 0
        %870 = vmatpush2.bf16.msra.mxu0 0
        %871 = vmatprep.subr.bf16.mxu0 0
        %872 = vmatpush2.bf16.msra.mxu0 0
        %873 = vmatprep.subr.bf16.mxu0 0
        %874 = vmatpush2.bf16.msra.mxu0 0
        %875 = vmatprep.subr.bf16.mxu0 0
        %876 = vmatpush2.bf16.msra.mxu0 0
        %877 = vmatprep.mubr.bf16.mxu0 0
        %878 = vmatmul.mubr.bf16.gmra.mxu0 %v638
        %v879 = vpop.f32.mrf.mxu0
        %v880 = vadd.f32 %v319, %v879
        %v881 = vpop.f32.mrf.mxu0
        %v882 = vadd.f32 %v323, %v881
        %v883 = vpop.f32.mrf.mxu0
        %v884 = vpop.f32.mrf.mxu0
        %885 = vdwg.mxu0
        %886 = vmatprep.subr.bf16.mxu0 0
        %887 = vmatpush1.bf16.msra.mxu0 0
        %888 = vmatprep.subr.bf16.mxu0 0
        %889 = vmatpush1.bf16.msra.mxu0 0
        %890 = vmatprep.subr.bf16.mxu0 0
        %891 = vmatpush1.bf16.msra.mxu0 0
        %892 = vmatprep.subr.bf16.mxu0 0
        %893 = vmatpush1.bf16.msra.mxu0 0
        %894 = vmatprep.subr.bf16.mxu0 0
        %895 = vmatpush1.bf16.msra.mxu0 0
        %896 = vmatprep.subr.bf16.mxu0 0
        %897 = vmatpush1.bf16.msra.mxu0 0
        %898 = vmatprep.subr.bf16.mxu0 %v577
        %899 = vmatpush1.bf16.msra.mxu0 %v576
        %900 = vmatprep.subr.bf16.mxu0 %v553
        %901 = vmatpush1.bf16.msra.mxu0 %v552
        %902 = vmatprep.subr.bf16.mxu0 0
        %903 = vmatpush2.bf16.msra.mxu0 0
        %904 = vmatprep.subr.bf16.mxu0 0
        %905 = vmatpush2.bf16.msra.mxu0 0
        %906 = vmatprep.subr.bf16.mxu0 0
        %907 = vmatpush2.bf16.msra.mxu0 0
        %908 = vmatprep.subr.bf16.mxu0 0
        %909 = vmatpush2.bf16.msra.mxu0 0
        %910 = vmatprep.subr.bf16.mxu0 0
        %911 = vmatpush2.bf16.msra.mxu0 0
        %912 = vmatprep.subr.bf16.mxu0 0
        %913 = vmatpush2.bf16.msra.mxu0 0
        %914 = vmatprep.subr.bf16.mxu0 0
        %915 = vmatpush2.bf16.msra.mxu0 0
        %916 = vmatprep.subr.bf16.mxu0 0
        %917 = vmatpush2.bf16.msra.mxu0 0
        %918 = vmatprep.mubr.bf16.mxu0 0
        %919 = vmatmul.mubr.bf16.gmra.mxu0 %v638
        %v920 = vpop.f32.mrf.mxu0
        %v921 = vadd.f32 %v327, %v920
        %v922 = vpop.f32.mrf.mxu0
        %v923 = vadd.f32 %v331, %v922
        %v924 = vpop.f32.mrf.mxu0
        %v925 = vpop.f32.mrf.mxu0
        %926 = vdwg.mxu0
        %927 = vmatprep.subr.bf16.mxu0 0
        %928 = vmatpush1.bf16.msra.mxu0 0
        %929 = vmatprep.subr.bf16.mxu0 0
        %930 = vmatpush1.bf16.msra.mxu0 0
        %931 = vmatprep.subr.bf16.mxu0 0
        %932 = vmatpush1.bf16.msra.mxu0 0
        %933 = vmatprep.subr.bf16.mxu0 0
        %934 = vmatpush1.bf16.msra.mxu0 0
        %935 = vmatprep.subr.bf16.mxu0 0
        %936 = vmatpush1.bf16.msra.mxu0 0
        %937 = vmatprep.subr.bf16.mxu0 0
        %938 = vmatpush1.bf16.msra.mxu0 0
        %939 = vmatprep.subr.bf16.mxu0 %v579
        %940 = vmatpush1.bf16.msra.mxu0 %v578
        %941 = vmatprep.subr.bf16.mxu0 %v555
        %942 = vmatpush1.bf16.msra.mxu0 %v554
        %943 = vmatprep.subr.bf16.mxu0 0
        %944 = vmatpush2.bf16.msra.mxu0 0
        %945 = vmatprep.subr.bf16.mxu0 0
        %946 = vmatpush2.bf16.msra.mxu0 0
        %947 = vmatprep.subr.bf16.mxu0 0
        %948 = vmatpush2.bf16.msra.mxu0 0
        %949 = vmatprep.subr.bf16.mxu0 0
        %950 = vmatpush2.bf16.msra.mxu0 0
        %951 = vmatprep.subr.bf16.mxu0 0
        %952 = vmatpush2.bf16.msra.mxu0 0
        %953 = vmatprep.subr.bf16.mxu0 0
        %954 = vmatpush2.bf16.msra.mxu0 0
        %955 = vmatprep.subr.bf16.mxu0 0
        %956 = vmatpush2.bf16.msra.mxu0 0
        %957 = vmatprep.subr.bf16.mxu0 0
        %958 = vmatpush2.bf16.msra.mxu0 0
        %959 = vmatprep.mubr.bf16.mxu0 0
        %960 = vmatmul.mubr.bf16.gmra.mxu0 %v638
        %v961 = vpop.f32.mrf.mxu0
        %v962 = vadd.f32 %v335, %v961
        %v963 = vpop.f32.mrf.mxu0
        %v964 = vadd.f32 %v339, %v963
        %v965 = vpop.f32.mrf.mxu0
        %v966 = vpop.f32.mrf.mxu0
        %967 = vdwg.mxu0
        %968 = vmatprep.subr.bf16.mxu0 0
        %969 = vmatpush1.bf16.msra.mxu0 0
        %970 = vmatprep.subr.bf16.mxu0 0
        %971 = vmatpush1.bf16.msra.mxu0 0
        %972 = vmatprep.subr.bf16.mxu0 0
        %973 = vmatpush1.bf16.msra.mxu0 0
        %974 = vmatprep.subr.bf16.mxu0 0
        %975 = vmatpush1.bf16.msra.mxu0 0
        %976 = vmatprep.subr.bf16.mxu0 0
        %977 = vmatpush1.bf16.msra.mxu0 0
        %978 = vmatprep.subr.bf16.mxu0 0
        %979 = vmatpush1.bf16.msra.mxu0 0
        %980 = vmatprep.subr.bf16.mxu0 %v581
        %981 = vmatpush1.bf16.msra.mxu0 %v580
        %982 = vmatprep.subr.bf16.mxu0 %v557
        %983 = vmatpush1.bf16.msra.mxu0 %v556
        %984 = vmatprep.subr.bf16.mxu0 0
        %985 = vmatpush2.bf16.msra.mxu0 0
        %986 = vmatprep.subr.bf16.mxu0 0
        %987 = vmatpush2.bf16.msra.mxu0 0
        %988 = vmatprep.subr.bf16.mxu0 0
        %989 = vmatpush2.bf16.msra.mxu0 0
        %990 = vmatprep.subr.bf16.mxu0 0
        %991 = vmatpush2.bf16.msra.mxu0 0
        %992 = vmatprep.subr.bf16.mxu0 0
        %993 = vmatpush2.bf16.msra.mxu0 0
        %994 = vmatprep.subr.bf16.mxu0 0
        %995 = vmatpush2.bf16.msra.mxu0 0
        %996 = vmatprep.subr.bf16.mxu0 0
        %997 = vmatpush2.bf16.msra.mxu0 0
        %998 = vmatprep.subr.bf16.mxu0 0
        %999 = vmatpush2.bf16.msra.mxu0 0
        %1000 = vmatprep.mubr.bf16.mxu0 0
        %1001 = vmatmul.mubr.bf16.gmra.mxu0 %v638
        %v1002 = vpop.f32.mrf.mxu0
        %v1003 = vadd.f32 %v343, %v1002
        %v1004 = vpop.f32.mrf.mxu0
        %v1005 = vadd.f32 %v347, %v1004
        %v1006 = vpop.f32.mrf.mxu0
        %v1007 = vpop.f32.mrf.mxu0
        %1008 = vdwg.mxu0
        %1009 = vmatprep.subr.bf16.mxu0 0
        %1010 = vmatpush1.bf16.msra.mxu0 0
        %1011 = vmatprep.subr.bf16.mxu0 0
        %1012 = vmatpush1.bf16.msra.mxu0 0
        %1013 = vmatprep.subr.bf16.mxu0 0
        %1014 = vmatpush1.bf16.msra.mxu0 0
        %1015 = vmatprep.subr.bf16.mxu0 0
        %1016 = vmatpush1.bf16.msra.mxu0 0
        %1017 = vmatprep.subr.bf16.mxu0 0
        %1018 = vmatpush1.bf16.msra.mxu0 0
        %1019 = vmatprep.subr.bf16.mxu0 0
        %1020 = vmatpush1.bf16.msra.mxu0 0
        %1021 = vmatprep.subr.bf16.mxu0 %v583
        %1022 = vmatpush1.bf16.msra.mxu0 %v582
        %1023 = vmatprep.subr.bf16.mxu0 %v559
        %1024 = vmatpush1.bf16.msra.mxu0 %v558
        %1025 = vmatprep.subr.bf16.mxu0 0
        %1026 = vmatpush2.bf16.msra.mxu0 0
        %1027 = vmatprep.subr.bf16.mxu0 0
        %1028 = vmatpush2.bf16.msra.mxu0 0
        %1029 = vmatprep.subr.bf16.mxu0 0
        %1030 = vmatpush2.bf16.msra.mxu0 0
        %1031 = vmatprep.subr.bf16.mxu0 0
        %1032 = vmatpush2.bf16.msra.mxu0 0
        %1033 = vmatprep.subr.bf16.mxu0 0
        %1034 = vmatpush2.bf16.msra.mxu0 0
        %1035 = vmatprep.subr.bf16.mxu0 0
        %1036 = vmatpush2.bf16.msra.mxu0 0
        %1037 = vmatprep.subr.bf16.mxu0 0
        %1038 = vmatpush2.bf16.msra.mxu0 0
        %1039 = vmatprep.subr.bf16.mxu0 0
        %1040 = vmatpush2.bf16.msra.mxu0 0
        %1041 = vmatprep.mubr.bf16.mxu0 0
        %1042 = vmatmul.mubr.bf16.gmra.mxu0 %v638
        %v1043 = vpop.f32.mrf.mxu0
        %v1044 = vadd.f32 %v351, %v1043
        %v1045 = vpop.f32.mrf.mxu0
        %v1046 = vadd.f32 %v355, %v1045
        %v1047 = vpop.f32.mrf.mxu0
        %v1048 = vpop.f32.mrf.mxu0
        %1049 = vdwg.mxu0
        %1050 = vmatprep.subr.bf16.mxu0 0
        %1051 = vmatpush1.bf16.msra.mxu0 0
        %1052 = vmatprep.subr.bf16.mxu0 0
        %1053 = vmatpush1.bf16.msra.mxu0 0
        %1054 = vmatprep.subr.bf16.mxu0 0
        %1055 = vmatpush1.bf16.msra.mxu0 0
        %1056 = vmatprep.subr.bf16.mxu0 0
        %1057 = vmatpush1.bf16.msra.mxu0 0
        %1058 = vmatprep.subr.bf16.mxu0 0
        %1059 = vmatpush1.bf16.msra.mxu0 0
        %1060 = vmatprep.subr.bf16.mxu0 0
        %1061 = vmatpush1.bf16.msra.mxu0 0
        %1062 = vmatprep.subr.bf16.mxu0 %v585
        %1063 = vmatpush1.bf16.msra.mxu0 %v584
        %1064 = vmatprep.subr.bf16.mxu0 %v561
        %1065 = vmatpush1.bf16.msra.mxu0 %v560
        %1066 = vmatprep.subr.bf16.mxu0 0
        %1067 = vmatpush2.bf16.msra.mxu0 0
        %1068 = vmatprep.subr.bf16.mxu0 0
        %1069 = vmatpush2.bf16.msra.mxu0 0
        %1070 = vmatprep.subr.bf16.mxu0 0
        %1071 = vmatpush2.bf16.msra.mxu0 0
        %1072 = vmatprep.subr.bf16.mxu0 0
        %1073 = vmatpush2.bf16.msra.mxu0 0
        %1074 = vmatprep.subr.bf16.mxu0 0
        %1075 = vmatpush2.bf16.msra.mxu0 0
        %1076 = vmatprep.subr.bf16.mxu0 0
        %1077 = vmatpush2.bf16.msra.mxu0 0
        %1078 = vmatprep.subr.bf16.mxu0 0
        %1079 = vmatpush2.bf16.msra.mxu0 0
        %1080 = vmatprep.subr.bf16.mxu0 0
        %1081 = vmatpush2.bf16.msra.mxu0 0
        %1082 = vmatprep.mubr.bf16.mxu0 0
        %1083 = vmatmul.mubr.bf16.gmra.mxu0 %v638
        %v1084 = vpop.f32.mrf.mxu0
        %v1085 = vadd.f32 %v359, %v1084
        %v1086 = vpop.f32.mrf.mxu0
        %v1087 = vadd.f32 %v363, %v1086
        %v1088 = vpop.f32.mrf.mxu0
        %v1089 = vpop.f32.mrf.mxu0
        %1090 = vdwg.mxu0
        %1091 = vmatprep.subr.bf16.mxu0 0
        %1092 = vmatpush1.bf16.msra.mxu0 0
        %1093 = vmatprep.subr.bf16.mxu0 0
        %1094 = vmatpush1.bf16.msra.mxu0 0
        %1095 = vmatprep.subr.bf16.mxu0 0
        %1096 = vmatpush1.bf16.msra.mxu0 0
        %1097 = vmatprep.subr.bf16.mxu0 0
        %1098 = vmatpush1.bf16.msra.mxu0 0
        %1099 = vmatprep.subr.bf16.mxu0 0
        %1100 = vmatpush1.bf16.msra.mxu0 0
        %1101 = vmatprep.subr.bf16.mxu0 0
        %1102 = vmatpush1.bf16.msra.mxu0 0
        %1103 = vmatprep.subr.bf16.mxu0 %v587
        %1104 = vmatpush1.bf16.msra.mxu0 %v586
        %1105 = vmatprep.subr.bf16.mxu0 %v563
        %1106 = vmatpush1.bf16.msra.mxu0 %v562
        %1107 = vmatprep.subr.bf16.mxu0 0
        %1108 = vmatpush2.bf16.msra.mxu0 0
        %1109 = vmatprep.subr.bf16.mxu0 0
        %1110 = vmatpush2.bf16.msra.mxu0 0
        %1111 = vmatprep.subr.bf16.mxu0 0
        %1112 = vmatpush2.bf16.msra.mxu0 0
        %1113 = vmatprep.subr.bf16.mxu0 0
        %1114 = vmatpush2.bf16.msra.mxu0 0
        %1115 = vmatprep.subr.bf16.mxu0 0
        %1116 = vmatpush2.bf16.msra.mxu0 0
        %1117 = vmatprep.subr.bf16.mxu0 0
        %1118 = vmatpush2.bf16.msra.mxu0 0
        %1119 = vmatprep.subr.bf16.mxu0 0
        %1120 = vmatpush2.bf16.msra.mxu0 0
        %1121 = vmatprep.subr.bf16.mxu0 0
        %1122 = vmatpush2.bf16.msra.mxu0 0
        %1123 = vmatprep.mubr.bf16.mxu0 0
        %1124 = vmatmul.mubr.bf16.gmra.mxu0 %v638
        %v1125 = vpop.f32.mrf.mxu0
        %v1126 = vadd.f32 %v367, %v1125
        %v1127 = vpop.f32.mrf.mxu0
        %v1128 = vadd.f32 %v371, %v1127
        %v1129 = vpop.f32.mrf.mxu0
        %v1130 = vpop.f32.mrf.mxu0
        %1131 = vdwg.mxu0
        %v1132 = vpack.c.bf16 %v675, %v675
        %v1133 = vpack.c.bf16 %v839, %v839
        %v1134 = vpack.c.bf16 %v1003, %v1003
        %1135 = vmatprep.subr.bf16.mxu0 0
        %1136 = vmatpush1.bf16.xpose.msra.mxu0 0
        %1137 = vmatprep.subr.bf16.mxu0 0
        %1138 = vmatpush1.bf16.xpose.msra.mxu0 0
        %1139 = vmatprep.subr.bf16.mxu0 0
        %1140 = vmatpush1.bf16.xpose.msra.mxu0 0
        %1141 = vmatprep.subr.bf16.mxu0 0
        %1142 = vmatpush1.bf16.xpose.msra.mxu0 0
        %1143 = vmatprep.subr.bf16.mxu0 0
        %1144 = vmatpush1.bf16.xpose.msra.mxu0 0
        %1145 = vmatprep.subr.bf16.mxu0 0
        %1146 = vmatpush1.bf16.xpose.msra.mxu0 0
        %1147 = vmatprep.subr.bf16.mxu0 0
        %1148 = vmatpush1.bf16.xpose.msra.mxu0 0
        %1149 = vmatprep.subr.bf16.mxu0 0
        %1150 = vmatpush1.bf16.xpose.msra.mxu0 %v1133
        %1151 = vmatprep.subr.bf16.mxu0 0
        %1152 = vmatpush2.bf16.xpose.msra.mxu0 0
        %1153 = vmatprep.subr.bf16.mxu0 0
        %1154 = vmatpush2.bf16.xpose.msra.mxu0 0
        %1155 = vmatprep.subr.bf16.mxu0 0
        %1156 = vmatpush2.bf16.xpose.msra.mxu0 0
        %1157 = vmatprep.subr.bf16.mxu0 0
        %1158 = vmatpush2.bf16.xpose.msra.mxu0 0
        %1159 = vmatprep.subr.bf16.mxu0 0
        %1160 = vmatpush2.bf16.xpose.msra.mxu0 0
        %1161 = vmatprep.subr.bf16.mxu0 0
        %1162 = vmatpush2.bf16.xpose.msra.mxu0 0
        %1163 = vmatprep.subr.bf16.mxu0 0
        %1164 = vmatpush2.bf16.xpose.msra.mxu0 0
        %1165 = vmatprep.subr.bf16.mxu0 0
        %1166 = vmatpush2.bf16.xpose.msra.mxu0 0
        %1167 = vmatprep.mubr.bf16.mxu0 0
        %1168 = vmatmul.mubr.bf16.gmra.mxu0 %v1132
        %v1169 = vpop.f32.mrf.mxu0
        %v1170 = vadd.f32 0.0, %v1169
        %v1171 = vpop.f32.mrf.mxu0
        %v1172 = vpop.f32.mrf.mxu0
        %v1173 = vpop.f32.mrf.mxu0
        %1174 = vdwg.mxu0
        %vm1175 = vcmask 64512
        %v1176 = vsel %vm1175, %v1170, -inf
        %1177 = vmax.xlane.f32.xlu0 %v1176
        %v1178 = vpop.xlane.xlu0 %1177
        %v1179 = vsub.f32 %v1170, %v1178
        %v1180 = vmul.f32 %v1179, 1.442695
        %v1181 = vpow.pop %v1180
        %v1182 = vsel %vm1175, %v1181, 0.0
        %1183 = vadd.xlane.f32.xlu0 %v1182
        %v1184 = vpop.xlane.xlu0 %1183
        %v1185 = vpack.c.bf16 %v1181, %v1181
        %v1187 = vsel %vm1175, %v1185, 0
        %vm1189 = vcmask 1043456
        %v1191 = vsel %vm1189, %v1134, 0
        %1193 = vmatprep.subr.bf16.mxu0 0
        %1194 = vmatpush1.bf16.msra.mxu0 0
        %1195 = vmatprep.subr.bf16.mxu0 0
        %1196 = vmatpush1.bf16.msra.mxu0 0
        %1197 = vmatprep.subr.bf16.mxu0 0
        %1198 = vmatpush1.bf16.msra.mxu0 0
        %1199 = vmatprep.subr.bf16.mxu0 0
        %1200 = vmatpush1.bf16.msra.mxu0 0
        %1201 = vmatprep.subr.bf16.mxu0 0
        %1202 = vmatpush1.bf16.msra.mxu0 0
        %1203 = vmatprep.subr.bf16.mxu0 0
        %1204 = vmatpush1.bf16.msra.mxu0 0
        %1205 = vmatprep.subr.bf16.mxu0 0
        %1206 = vmatpush1.bf16.msra.mxu0 0
        %1207 = vmatprep.subr.bf16.mxu0 0
        %1208 = vmatpush1.bf16.msra.mxu0 %v1191
        %1209 = vmatprep.subr.bf16.mxu0 0
        %1210 = vmatpush2.bf16.msra.mxu0 0
        %1211 = vmatprep.subr.bf16.mxu0 0
        %1212 = vmatpush2.bf16.msra.mxu0 0
        %1213 = vmatprep.subr.bf16.mxu0 0
        %1214 = vmatpush2.bf16.msra.mxu0 0
        %1215 = vmatprep.subr.bf16.mxu0 0
        %1216 = vmatpush2.bf16.msra.mxu0 0
        %1217 = vmatprep.subr.bf16.mxu0 0
        %1218 = vmatpush2.bf16.msra.mxu0 0
        %1219 = vmatprep.subr.bf16.mxu0 0
        %1220 = vmatpush2.bf16.msra.mxu0 0
        %1221 = vmatprep.subr.bf16.mxu0 0
        %1222 = vmatpush2.bf16.msra.mxu0 0
        %1223 = vmatprep.subr.bf16.mxu0 0
        %1224 = vmatpush2.bf16.msra.mxu0 0
        %1225 = vmatprep.mubr.bf16.mxu0 0
        %1226 = vmatmul.mubr.bf16.gmra.mxu0 %v1187
        %v1227 = vpop.f32.mrf.mxu0
        %v1228 = vadd.f32 0.0, %v1227
        %v1229 = vpop.f32.mrf.mxu0
        %v1230 = vpop.f32.mrf.mxu0
        %v1231 = vpop.f32.mrf.mxu0
        %1232 = vdwg.mxu0
        %v1233 = vrcp.pop %v1184
        %v1234 = vmul.f32 %v1233, 0.17677669
        %v1235 = vmul.f32 %v1228, %v1234
        %v1236 = vpack.c.bf16 %v1235, %v1235
        %1237 = vst [vmem:[#allocation2] sm:$0xf] %v1236
        %v1238 = vpack.c.bf16 %v677, %v677
        %v1239 = vpack.c.bf16 %v841, %v841
        %v1240 = vpack.c.bf16 %v1005, %v1005
        %1241 = vmatprep.subr.bf16.mxu0 0
        %1242 = vmatpush1.bf16.xpose.msra.mxu0 0
        %1243 = vmatprep.subr.bf16.mxu0 0
        %1244 = vmatpush1.bf16.xpose.msra.mxu0 0
        %1245 = vmatprep.subr.bf16.mxu0 0
        %1246 = vmatpush1.bf16.xpose.msra.mxu0 0
        %1247 = vmatprep.subr.bf16.mxu0 0
        %1248 = vmatpush1.bf16.xpose.msra.mxu0 0
        %1249 = vmatprep.subr.bf16.mxu0 0
        %1250 = vmatpush1.bf16.xpose.msra.mxu0 0
        %1251 = vmatprep.subr.bf16.mxu0 0
        %1252 = vmatpush1.bf16.xpose.msra.mxu0 0
        %1253 = vmatprep.subr.bf16.mxu0 0
        %1254 = vmatpush1.bf16.xpose.msra.mxu0 0
        %1255 = vmatprep.subr.bf16.mxu0 0
        %1256 = vmatpush1.bf16.xpose.msra.mxu0 %v1239
        %1257 = vmatprep.subr.bf16.mxu0 0
        %1258 = vmatpush2.bf16.xpose.msra.mxu0 0
        %1259 = vmatprep.subr.bf16.mxu0 0
        %1260 = vmatpush2.bf16.xpose.msra.mxu0 0
        %1261 = vmatprep.subr.bf16.mxu0 0
        %1262 = vmatpush2.bf16.xpose.msra.mxu0 0
        %1263 = vmatprep.subr.bf16.mxu0 0
        %1264 = vmatpush2.bf16.xpose.msra.mxu0 0
        %1265 = vmatprep.subr.bf16.mxu0 0
        %1266 = vmatpush2.bf16.xpose.msra.mxu0 0
        %1267 = vmatprep.subr.bf16.mxu0 0
        %1268 = vmatpush2.bf16.xpose.msra.mxu0 0
        %1269 = vmatprep.subr.bf16.mxu0 0
        %1270 = vmatpush2.bf16.xpose.msra.mxu0 0
        %1271 = vmatprep.subr.bf16.mxu0 0
        %1272 = vmatpush2.bf16.xpose.msra.mxu0 0
        %1273 = vmatprep.mubr.bf16.mxu0 0
        %1274 = vmatmul.mubr.bf16.gmra.mxu0 %v1238
        %v1275 = vpop.f32.mrf.mxu0
        %v1276 = vadd.f32 0.0, %v1275
        %v1277 = vpop.f32.mrf.mxu0
        %v1278 = vpop.f32.mrf.mxu0
        %v1279 = vpop.f32.mrf.mxu0
        %1280 = vdwg.mxu0
        %v1281 = vsel %vm1175, %v1276, -inf
        %1282 = vmax.xlane.f32.xlu0 %v1281
        %v1283 = vpop.xlane.xlu0 %1282
        %v1284 = vsub.f32 %v1276, %v1283
        %v1285 = vmul.f32 %v1284, 1.442695
        %v1286 = vpow.pop %v1285
        %v1287 = vsel %vm1175, %v1286, 0.0
        %1288 = vadd.xlane.f32.xlu0 %v1287
        %v1289 = vpop.xlane.xlu0 %1288
        %v1290 = vpack.c.bf16 %v1286, %v1286
        %v1292 = vsel %vm1175, %v1290, 0
        %v1295 = vsel %vm1189, %v1240, 0
        %1297 = vmatprep.subr.bf16.mxu0 0
        %1298 = vmatpush1.bf16.msra.mxu0 0
        %1299 = vmatprep.subr.bf16.mxu0 0
        %1300 = vmatpush1.bf16.msra.mxu0 0
        %1301 = vmatprep.subr.bf16.mxu0 0
        %1302 = vmatpush1.bf16.msra.mxu0 0
        %1303 = vmatprep.subr.bf16.mxu0 0
        %1304 = vmatpush1.bf16.msra.mxu0 0
        %1305 = vmatprep.subr.bf16.mxu0 0
        %1306 = vmatpush1.bf16.msra.mxu0 0
        %1307 = vmatprep.subr.bf16.mxu0 0
        %1308 = vmatpush1.bf16.msra.mxu0 0
        %1309 = vmatprep.subr.bf16.mxu0 0
        %1310 = vmatpush1.bf16.msra.mxu0 0
        %1311 = vmatprep.subr.bf16.mxu0 0
        %1312 = vmatpush1.bf16.msra.mxu0 %v1295
        %1313 = vmatprep.subr.bf16.mxu0 0
        %1314 = vmatpush2.bf16.msra.mxu0 0
        %1315 = vmatprep.subr.bf16.mxu0 0
        %1316 = vmatpush2.bf16.msra.mxu0 0
        %1317 = vmatprep.subr.bf16.mxu0 0
        %1318 = vmatpush2.bf16.msra.mxu0 0
        %1319 = vmatprep.subr.bf16.mxu0 0
        %1320 = vmatpush2.bf16.msra.mxu0 0
        %1321 = vmatprep.subr.bf16.mxu0 0
        %1322 = vmatpush2.bf16.msra.mxu0 0
        %1323 = vmatprep.subr.bf16.mxu0 0
        %1324 = vmatpush2.bf16.msra.mxu0 0
        %1325 = vmatprep.subr.bf16.mxu0 0
        %1326 = vmatpush2.bf16.msra.mxu0 0
        %1327 = vmatprep.subr.bf16.mxu0 0
        %1328 = vmatpush2.bf16.msra.mxu0 0
        %1329 = vmatprep.mubr.bf16.mxu0 0
        %1330 = vmatmul.mubr.bf16.gmra.mxu0 %v1292
        %v1331 = vpop.f32.mrf.mxu0
        %v1332 = vadd.f32 0.0, %v1331
        %v1333 = vpop.f32.mrf.mxu0
        %v1334 = vpop.f32.mrf.mxu0
        %v1335 = vpop.f32.mrf.mxu0
        %1336 = vdwg.mxu0
        %v1337 = vrcp.pop %v1289
        %v1338 = vmul.f32 %v1337, 0.17677669
        %v1339 = vmul.f32 %v1332, %v1338
        %v1340 = vpack.c.bf16 %v1339, %v1339
        %1341 = vst [vmem:[#allocation2 + $0x4] sm:$0xf] %v1340
        %v1342 = vpack.c.bf16 %v716, %v716
        %v1343 = vpack.c.bf16 %v880, %v880
        %v1344 = vpack.c.bf16 %v1044, %v1044
        %1345 = vmatprep.subr.bf16.mxu0 0
        %1346 = vmatpush1.bf16.xpose.msra.mxu0 0
        %1347 = vmatprep.subr.bf16.mxu0 0
        %1348 = vmatpush1.bf16.xpose.msra.mxu0 0
        %1349 = vmatprep.subr.bf16.mxu0 0
        %1350 = vmatpush1.bf16.xpose.msra.mxu0 0
        %1351 = vmatprep.subr.bf16.mxu0 0
        %1352 = vmatpush1.bf16.xpose.msra.mxu0 0
        %1353 = vmatprep.subr.bf16.mxu0 0
        %1354 = vmatpush1.bf16.xpose.msra.mxu0 0
        %1355 = vmatprep.subr.bf16.mxu0 0
        %1356 = vmatpush1.bf16.xpose.msra.mxu0 0
        %1357 = vmatprep.subr.bf16.mxu0 0
        %1358 = vmatpush1.bf16.xpose.msra.mxu0 0
        %1359 = vmatprep.subr.bf16.mxu0 0
        %1360 = vmatpush1.bf16.xpose.msra.mxu0 %v1343
        %1361 = vmatprep.subr.bf16.mxu0 0
        %1362 = vmatpush2.bf16.xpose.msra.mxu0 0
        %1363 = vmatprep.subr.bf16.mxu0 0
        %1364 = vmatpush2.bf16.xpose.msra.mxu0 0
        %1365 = vmatprep.subr.bf16.mxu0 0
        %1366 = vmatpush2.bf16.xpose.msra.mxu0 0
        %1367 = vmatprep.subr.bf16.mxu0 0
        %1368 = vmatpush2.bf16.xpose.msra.mxu0 0
        %1369 = vmatprep.subr.bf16.mxu0 0
        %1370 = vmatpush2.bf16.xpose.msra.mxu0 0
        %1371 = vmatprep.subr.bf16.mxu0 0
        %1372 = vmatpush2.bf16.xpose.msra.mxu0 0
        %1373 = vmatprep.subr.bf16.mxu0 0
        %1374 = vmatpush2.bf16.xpose.msra.mxu0 0
        %1375 = vmatprep.subr.bf16.mxu0 0
        %1376 = vmatpush2.bf16.xpose.msra.mxu0 0
        %1377 = vmatprep.mubr.bf16.mxu0 0
        %1378 = vmatmul.mubr.bf16.gmra.mxu0 %v1342
        %v1379 = vpop.f32.mrf.mxu0
        %v1380 = vadd.f32 0.0, %v1379
        %v1381 = vpop.f32.mrf.mxu0
        %v1382 = vpop.f32.mrf.mxu0
        %v1383 = vpop.f32.mrf.mxu0
        %1384 = vdwg.mxu0
        %v1385 = vsel %vm1175, %v1380, -inf
        %1386 = vmax.xlane.f32.xlu0 %v1385
        %v1387 = vpop.xlane.xlu0 %1386
        %v1388 = vsub.f32 %v1380, %v1387
        %v1389 = vmul.f32 %v1388, 1.442695
        %v1390 = vpow.pop %v1389
        %v1391 = vsel %vm1175, %v1390, 0.0
        %1392 = vadd.xlane.f32.xlu0 %v1391
        %v1393 = vpop.xlane.xlu0 %1392
        %v1394 = vpack.c.bf16 %v1390, %v1390
        %v1396 = vsel %vm1175, %v1394, 0
        %v1399 = vsel %vm1189, %v1344, 0
        %1401 = vmatprep.subr.bf16.mxu0 0
        %1402 = vmatpush1.bf16.msra.mxu0 0
        %1403 = vmatprep.subr.bf16.mxu0 0
        %1404 = vmatpush1.bf16.msra.mxu0 0
        %1405 = vmatprep.subr.bf16.mxu0 0
        %1406 = vmatpush1.bf16.msra.mxu0 0
        %1407 = vmatprep.subr.bf16.mxu0 0
        %1408 = vmatpush1.bf16.msra.mxu0 0
        %1409 = vmatprep.subr.bf16.mxu0 0
        %1410 = vmatpush1.bf16.msra.mxu0 0
        %1411 = vmatprep.subr.bf16.mxu0 0
        %1412 = vmatpush1.bf16.msra.mxu0 0
        %1413 = vmatprep.subr.bf16.mxu0 0
        %1414 = vmatpush1.bf16.msra.mxu0 0
        %1415 = vmatprep.subr.bf16.mxu0 0
        %1416 = vmatpush1.bf16.msra.mxu0 %v1399
        %1417 = vmatprep.subr.bf16.mxu0 0
        %1418 = vmatpush2.bf16.msra.mxu0 0
        %1419 = vmatprep.subr.bf16.mxu0 0
        %1420 = vmatpush2.bf16.msra.mxu0 0
        %1421 = vmatprep.subr.bf16.mxu0 0
        %1422 = vmatpush2.bf16.msra.mxu0 0
        %1423 = vmatprep.subr.bf16.mxu0 0
        %1424 = vmatpush2.bf16.msra.mxu0 0
        %1425 = vmatprep.subr.bf16.mxu0 0
        %1426 = vmatpush2.bf16.msra.mxu0 0
        %1427 = vmatprep.subr.bf16.mxu0 0
        %1428 = vmatpush2.bf16.msra.mxu0 0
        %1429 = vmatprep.subr.bf16.mxu0 0
        %1430 = vmatpush2.bf16.msra.mxu0 0
        %1431 = vmatprep.subr.bf16.mxu0 0
        %1432 = vmatpush2.bf16.msra.mxu0 0
        %1433 = vmatprep.mubr.bf16.mxu0 0
        %1434 = vmatmul.mubr.bf16.gmra.mxu0 %v1396
        %v1435 = vpop.f32.mrf.mxu0
        %v1436 = vadd.f32 0.0, %v1435
        %v1437 = vpop.f32.mrf.mxu0
        %v1438 = vpop.f32.mrf.mxu0
        %v1439 = vpop.f32.mrf.mxu0
        %1440 = vdwg.mxu0
        %v1441 = vrcp.pop %v1393
        %v1442 = vmul.f32 %v1441, 0.17677669
        %v1443 = vmul.f32 %v1436, %v1442
        %v1444 = vpack.c.bf16 %v1443, %v1443
        %1445 = vst [vmem:[#allocation2 + $0x8] sm:$0xf] %v1444
        %v1446 = vpack.c.bf16 %v718, %v718
        %v1447 = vpack.c.bf16 %v882, %v882
        %v1448 = vpack.c.bf16 %v1046, %v1046
        %1449 = vmatprep.subr.bf16.mxu0 0
        %1450 = vmatpush1.bf16.xpose.msra.mxu0 0
        %1451 = vmatprep.subr.bf16.mxu0 0
        %1452 = vmatpush1.bf16.xpose.msra.mxu0 0
        %1453 = vmatprep.subr.bf16.mxu0 0
        %1454 = vmatpush1.bf16.xpose.msra.mxu0 0
        %1455 = vmatprep.subr.bf16.mxu0 0
        %1456 = vmatpush1.bf16.xpose.msra.mxu0 0
        %1457 = vmatprep.subr.bf16.mxu0 0
        %1458 = vmatpush1.bf16.xpose.msra.mxu0 0
        %1459 = vmatprep.subr.bf16.mxu0 0
        %1460 = vmatpush1.bf16.xpose.msra.mxu0 0
        %1461 = vmatprep.subr.bf16.mxu0 0
        %1462 = vmatpush1.bf16.xpose.msra.mxu0 0
        %1463 = vmatprep.subr.bf16.mxu0 0
        %1464 = vmatpush1.bf16.xpose.msra.mxu0 %v1447
        %1465 = vmatprep.subr.bf16.mxu0 0
        %1466 = vmatpush2.bf16.xpose.msra.mxu0 0
        %1467 = vmatprep.subr.bf16.mxu0 0
        %1468 = vmatpush2.bf16.xpose.msra.mxu0 0
        %1469 = vmatprep.subr.bf16.mxu0 0
        %1470 = vmatpush2.bf16.xpose.msra.mxu0 0
        %1471 = vmatprep.subr.bf16.mxu0 0
        %1472 = vmatpush2.bf16.xpose.msra.mxu0 0
        %1473 = vmatprep.subr.bf16.mxu0 0
        %1474 = vmatpush2.bf16.xpose.msra.mxu0 0
        %1475 = vmatprep.subr.bf16.mxu0 0
        %1476 = vmatpush2.bf16.xpose.msra.mxu0 0
        %1477 = vmatprep.subr.bf16.mxu0 0
        %1478 = vmatpush2.bf16.xpose.msra.mxu0 0
        %1479 = vmatprep.subr.bf16.mxu0 0
        %1480 = vmatpush2.bf16.xpose.msra.mxu0 0
        %1481 = vmatprep.mubr.bf16.mxu0 0
        %1482 = vmatmul.mubr.bf16.gmra.mxu0 %v1446
        %v1483 = vpop.f32.mrf.mxu0
        %v1484 = vadd.f32 0.0, %v1483
        %v1485 = vpop.f32.mrf.mxu0
        %v1486 = vpop.f32.mrf.mxu0
        %v1487 = vpop.f32.mrf.mxu0
        %1488 = vdwg.mxu0
        %v1489 = vsel %vm1175, %v1484, -inf
        %1490 = vmax.xlane.f32.xlu0 %v1489
        %v1491 = vpop.xlane.xlu0 %1490
        %v1492 = vsub.f32 %v1484, %v1491
        %v1493 = vmul.f32 %v1492, 1.442695
        %v1494 = vpow.pop %v1493
        %v1495 = vsel %vm1175, %v1494, 0.0
        %1496 = vadd.xlane.f32.xlu0 %v1495
        %v1497 = vpop.xlane.xlu0 %1496
        %v1498 = vpack.c.bf16 %v1494, %v1494
        %v1500 = vsel %vm1175, %v1498, 0
        %v1503 = vsel %vm1189, %v1448, 0
        %1505 = vmatprep.subr.bf16.mxu0 0
        %1506 = vmatpush1.bf16.msra.mxu0 0
        %1507 = vmatprep.subr.bf16.mxu0 0
        %1508 = vmatpush1.bf16.msra.mxu0 0
        %1509 = vmatprep.subr.bf16.mxu0 0
        %1510 = vmatpush1.bf16.msra.mxu0 0
        %1511 = vmatprep.subr.bf16.mxu0 0
        %1512 = vmatpush1.bf16.msra.mxu0 0
        %1513 = vmatprep.subr.bf16.mxu0 0
        %1514 = vmatpush1.bf16.msra.mxu0 0
        %1515 = vmatprep.subr.bf16.mxu0 0
        %1516 = vmatpush1.bf16.msra.mxu0 0
        %1517 = vmatprep.subr.bf16.mxu0 0
        %1518 = vmatpush1.bf16.msra.mxu0 0
        %1519 = vmatprep.subr.bf16.mxu0 0
        %1520 = vmatpush1.bf16.msra.mxu0 %v1503
        %1521 = vmatprep.subr.bf16.mxu0 0
        %1522 = vmatpush2.bf16.msra.mxu0 0
        %1523 = vmatprep.subr.bf16.mxu0 0
        %1524 = vmatpush2.bf16.msra.mxu0 0
        %1525 = vmatprep.subr.bf16.mxu0 0
        %1526 = vmatpush2.bf16.msra.mxu0 0
        %1527 = vmatprep.subr.bf16.mxu0 0
        %1528 = vmatpush2.bf16.msra.mxu0 0
        %1529 = vmatprep.subr.bf16.mxu0 0
        %1530 = vmatpush2.bf16.msra.mxu0 0
        %1531 = vmatprep.subr.bf16.mxu0 0
        %1532 = vmatpush2.bf16.msra.mxu0 0
        %1533 = vmatprep.subr.bf16.mxu0 0
        %1534 = vmatpush2.bf16.msra.mxu0 0
        %1535 = vmatprep.subr.bf16.mxu0 0
        %1536 = vmatpush2.bf16.msra.mxu0 0
        %1537 = vmatprep.mubr.bf16.mxu0 0
        %1538 = vmatmul.mubr.bf16.gmra.mxu0 %v1500
        %v1539 = vpop.f32.mrf.mxu0
        %v1540 = vadd.f32 0.0, %v1539
        %v1541 = vpop.f32.mrf.mxu0
        %v1542 = vpop.f32.mrf.mxu0
        %v1543 = vpop.f32.mrf.mxu0
        %1544 = vdwg.mxu0
        %v1545 = vrcp.pop %v1497
        %v1546 = vmul.f32 %v1545, 0.17677669
        %v1547 = vmul.f32 %v1540, %v1546
        %v1548 = vpack.c.bf16 %v1547, %v1547
        %1549 = vst [vmem:[#allocation2 + $0xc] sm:$0xf] %v1548
        %v1550 = vpack.c.bf16 %v757, %v757
        %v1551 = vpack.c.bf16 %v921, %v921
        %v1552 = vpack.c.bf16 %v1085, %v1085
        %1553 = vmatprep.subr.bf16.mxu0 0
        %1554 = vmatpush1.bf16.xpose.msra.mxu0 0
        %1555 = vmatprep.subr.bf16.mxu0 0
        %1556 = vmatpush1.bf16.xpose.msra.mxu0 0
        %1557 = vmatprep.subr.bf16.mxu0 0
        %1558 = vmatpush1.bf16.xpose.msra.mxu0 0
        %1559 = vmatprep.subr.bf16.mxu0 0
        %1560 = vmatpush1.bf16.xpose.msra.mxu0 0
        %1561 = vmatprep.subr.bf16.mxu0 0
        %1562 = vmatpush1.bf16.xpose.msra.mxu0 0
        %1563 = vmatprep.subr.bf16.mxu0 0
        %1564 = vmatpush1.bf16.xpose.msra.mxu0 0
        %1565 = vmatprep.subr.bf16.mxu0 0
        %1566 = vmatpush1.bf16.xpose.msra.mxu0 0
        %1567 = vmatprep.subr.bf16.mxu0 0
        %1568 = vmatpush1.bf16.xpose.msra.mxu0 %v1551
        %1569 = vmatprep.subr.bf16.mxu0 0
        %1570 = vmatpush2.bf16.xpose.msra.mxu0 0
        %1571 = vmatprep.subr.bf16.mxu0 0
        %1572 = vmatpush2.bf16.xpose.msra.mxu0 0
        %1573 = vmatprep.subr.bf16.mxu0 0
        %1574 = vmatpush2.bf16.xpose.msra.mxu0 0
        %1575 = vmatprep.subr.bf16.mxu0 0
        %1576 = vmatpush2.bf16.xpose.msra.mxu0 0
        %1577 = vmatprep.subr.bf16.mxu0 0
        %1578 = vmatpush2.bf16.xpose.msra.mxu0 0
        %1579 = vmatprep.subr.bf16.mxu0 0
        %1580 = vmatpush2.bf16.xpose.msra.mxu0 0
        %1581 = vmatprep.subr.bf16.mxu0 0
        %1582 = vmatpush2.bf16.xpose.msra.mxu0 0
        %1583 = vmatprep.subr.bf16.mxu0 0
        %1584 = vmatpush2.bf16.xpose.msra.mxu0 0
        %1585 = vmatprep.mubr.bf16.mxu0 0
        %1586 = vmatmul.mubr.bf16.gmra.mxu0 %v1550
        %v1587 = vpop.f32.mrf.mxu0
        %v1588 = vadd.f32 0.0, %v1587
        %v1589 = vpop.f32.mrf.mxu0
        %v1590 = vpop.f32.mrf.mxu0
        %v1591 = vpop.f32.mrf.mxu0
        %1592 = vdwg.mxu0
        %v1593 = vsel %vm1175, %v1588, -inf
        %1594 = vmax.xlane.f32.xlu0 %v1593
        %v1595 = vpop.xlane.xlu0 %1594
        %v1596 = vsub.f32 %v1588, %v1595
        %v1597 = vmul.f32 %v1596, 1.442695
        %v1598 = vpow.pop %v1597
        %v1599 = vsel %vm1175, %v1598, 0.0
        %1600 = vadd.xlane.f32.xlu0 %v1599
        %v1601 = vpop.xlane.xlu0 %1600
        %v1602 = vpack.c.bf16 %v1598, %v1598
        %v1604 = vsel %vm1175, %v1602, 0
        %v1607 = vsel %vm1189, %v1552, 0
        %1609 = vmatprep.subr.bf16.mxu0 0
        %1610 = vmatpush1.bf16.msra.mxu0 0
        %1611 = vmatprep.subr.bf16.mxu0 0
        %1612 = vmatpush1.bf16.msra.mxu0 0
        %1613 = vmatprep.subr.bf16.mxu0 0
        %1614 = vmatpush1.bf16.msra.mxu0 0
        %1615 = vmatprep.subr.bf16.mxu0 0
        %1616 = vmatpush1.bf16.msra.mxu0 0
        %1617 = vmatprep.subr.bf16.mxu0 0
        %1618 = vmatpush1.bf16.msra.mxu0 0
        %1619 = vmatprep.subr.bf16.mxu0 0
        %1620 = vmatpush1.bf16.msra.mxu0 0
        %1621 = vmatprep.subr.bf16.mxu0 0
        %1622 = vmatpush1.bf16.msra.mxu0 0
        %1623 = vmatprep.subr.bf16.mxu0 0
        %1624 = vmatpush1.bf16.msra.mxu0 %v1607
        %1625 = vmatprep.subr.bf16.mxu0 0
        %1626 = vmatpush2.bf16.msra.mxu0 0
        %1627 = vmatprep.subr.bf16.mxu0 0
        %1628 = vmatpush2.bf16.msra.mxu0 0
        %1629 = vmatprep.subr.bf16.mxu0 0
        %1630 = vmatpush2.bf16.msra.mxu0 0
        %1631 = vmatprep.subr.bf16.mxu0 0
        %1632 = vmatpush2.bf16.msra.mxu0 0
        %1633 = vmatprep.subr.bf16.mxu0 0
        %1634 = vmatpush2.bf16.msra.mxu0 0
        %1635 = vmatprep.subr.bf16.mxu0 0
        %1636 = vmatpush2.bf16.msra.mxu0 0
        %1637 = vmatprep.subr.bf16.mxu0 0
        %1638 = vmatpush2.bf16.msra.mxu0 0
        %1639 = vmatprep.subr.bf16.mxu0 0
        %1640 = vmatpush2.bf16.msra.mxu0 0
        %1641 = vmatprep.mubr.bf16.mxu0 0
        %1642 = vmatmul.mubr.bf16.gmra.mxu0 %v1604
        %v1643 = vpop.f32.mrf.mxu0
        %v1644 = vadd.f32 0.0, %v1643
        %v1645 = vpop.f32.mrf.mxu0
        %v1646 = vpop.f32.mrf.mxu0
        %v1647 = vpop.f32.mrf.mxu0
        %1648 = vdwg.mxu0
        %v1649 = vrcp.pop %v1601
        %v1650 = vmul.f32 %v1649, 0.17677669
        %v1651 = vmul.f32 %v1644, %v1650
        %v1652 = vpack.c.bf16 %v1651, %v1651
        %1653 = vst [vmem:[#allocation2 + $0x10] sm:$0xf] %v1652
        %v1654 = vpack.c.bf16 %v759, %v759
        %v1655 = vpack.c.bf16 %v923, %v923
        %v1656 = vpack.c.bf16 %v1087, %v1087
        %1657 = vmatprep.subr.bf16.mxu0 0
        %1658 = vmatpush1.bf16.xpose.msra.mxu0 0
        %1659 = vmatprep.subr.bf16.mxu0 0
        %1660 = vmatpush1.bf16.xpose.msra.mxu0 0
        %1661 = vmatprep.subr.bf16.mxu0 0
        %1662 = vmatpush1.bf16.xpose.msra.mxu0 0
        %1663 = vmatprep.subr.bf16.mxu0 0
        %1664 = vmatpush1.bf16.xpose.msra.mxu0 0
        %1665 = vmatprep.subr.bf16.mxu0 0
        %1666 = vmatpush1.bf16.xpose.msra.mxu0 0
        %1667 = vmatprep.subr.bf16.mxu0 0
        %1668 = vmatpush1.bf16.xpose.msra.mxu0 0
        %1669 = vmatprep.subr.bf16.mxu0 0
        %1670 = vmatpush1.bf16.xpose.msra.mxu0 0
        %1671 = vmatprep.subr.bf16.mxu0 0
        %1672 = vmatpush1.bf16.xpose.msra.mxu0 %v1655
        %1673 = vmatprep.subr.bf16.mxu0 0
        %1674 = vmatpush2.bf16.xpose.msra.mxu0 0
        %1675 = vmatprep.subr.bf16.mxu0 0
        %1676 = vmatpush2.bf16.xpose.msra.mxu0 0
        %1677 = vmatprep.subr.bf16.mxu0 0
        %1678 = vmatpush2.bf16.xpose.msra.mxu0 0
        %1679 = vmatprep.subr.bf16.mxu0 0
        %1680 = vmatpush2.bf16.xpose.msra.mxu0 0
        %1681 = vmatprep.subr.bf16.mxu0 0
        %1682 = vmatpush2.bf16.xpose.msra.mxu0 0
        %1683 = vmatprep.subr.bf16.mxu0 0
        %1684 = vmatpush2.bf16.xpose.msra.mxu0 0
        %1685 = vmatprep.subr.bf16.mxu0 0
        %1686 = vmatpush2.bf16.xpose.msra.mxu0 0
        %1687 = vmatprep.subr.bf16.mxu0 0
        %1688 = vmatpush2.bf16.xpose.msra.mxu0 0
        %1689 = vmatprep.mubr.bf16.mxu0 0
        %1690 = vmatmul.mubr.bf16.gmra.mxu0 %v1654
        %v1691 = vpop.f32.mrf.mxu0
        %v1692 = vadd.f32 0.0, %v1691
        %v1693 = vpop.f32.mrf.mxu0
        %v1694 = vpop.f32.mrf.mxu0
        %v1695 = vpop.f32.mrf.mxu0
        %1696 = vdwg.mxu0
        %v1697 = vsel %vm1175, %v1692, -inf
        %1698 = vmax.xlane.f32.xlu0 %v1697
        %v1699 = vpop.xlane.xlu0 %1698
        %v1700 = vsub.f32 %v1692, %v1699
        %v1701 = vmul.f32 %v1700, 1.442695
        %v1702 = vpow.pop %v1701
        %v1703 = vsel %vm1175, %v1702, 0.0
        %1704 = vadd.xlane.f32.xlu0 %v1703
        %v1705 = vpop.xlane.xlu0 %1704
        %v1706 = vpack.c.bf16 %v1702, %v1702
        %v1708 = vsel %vm1175, %v1706, 0
        %v1711 = vsel %vm1189, %v1656, 0
        %1713 = vmatprep.subr.bf16.mxu0 0
        %1714 = vmatpush1.bf16.msra.mxu0 0
        %1715 = vmatprep.subr.bf16.mxu0 0
        %1716 = vmatpush1.bf16.msra.mxu0 0
        %1717 = vmatprep.subr.bf16.mxu0 0
        %1718 = vmatpush1.bf16.msra.mxu0 0
        %1719 = vmatprep.subr.bf16.mxu0 0
        %1720 = vmatpush1.bf16.msra.mxu0 0
        %1721 = vmatprep.subr.bf16.mxu0 0
        %1722 = vmatpush1.bf16.msra.mxu0 0
        %1723 = vmatprep.subr.bf16.mxu0 0
        %1724 = vmatpush1.bf16.msra.mxu0 0
        %1725 = vmatprep.subr.bf16.mxu0 0
        %1726 = vmatpush1.bf16.msra.mxu0 0
        %1727 = vmatprep.subr.bf16.mxu0 0
        %1728 = vmatpush1.bf16.msra.mxu0 %v1711
        %1729 = vmatprep.subr.bf16.mxu0 0
        %1730 = vmatpush2.bf16.msra.mxu0 0
        %1731 = vmatprep.subr.bf16.mxu0 0
        %1732 = vmatpush2.bf16.msra.mxu0 0
        %1733 = vmatprep.subr.bf16.mxu0 0
        %1734 = vmatpush2.bf16.msra.mxu0 0
        %1735 = vmatprep.subr.bf16.mxu0 0
        %1736 = vmatpush2.bf16.msra.mxu0 0
        %1737 = vmatprep.subr.bf16.mxu0 0
        %1738 = vmatpush2.bf16.msra.mxu0 0
        %1739 = vmatprep.subr.bf16.mxu0 0
        %1740 = vmatpush2.bf16.msra.mxu0 0
        %1741 = vmatprep.subr.bf16.mxu0 0
        %1742 = vmatpush2.bf16.msra.mxu0 0
        %1743 = vmatprep.subr.bf16.mxu0 0
        %1744 = vmatpush2.bf16.msra.mxu0 0
        %1745 = vmatprep.mubr.bf16.mxu0 0
        %1746 = vmatmul.mubr.bf16.gmra.mxu0 %v1708
        %v1747 = vpop.f32.mrf.mxu0
        %v1748 = vadd.f32 0.0, %v1747
        %v1749 = vpop.f32.mrf.mxu0
        %v1750 = vpop.f32.mrf.mxu0
        %v1751 = vpop.f32.mrf.mxu0
        %1752 = vdwg.mxu0
        %v1753 = vrcp.pop %v1705
        %v1754 = vmul.f32 %v1753, 0.17677669
        %v1755 = vmul.f32 %v1748, %v1754
        %v1756 = vpack.c.bf16 %v1755, %v1755
        %1757 = vst [vmem:[#allocation2 + $0x14] sm:$0xf] %v1756
        %v1758 = vpack.c.bf16 %v798, %v798
        %v1759 = vpack.c.bf16 %v962, %v962
        %v1760 = vpack.c.bf16 %v1126, %v1126
        %1761 = vmatprep.subr.bf16.mxu0 0
        %1762 = vmatpush1.bf16.xpose.msra.mxu0 0
        %1763 = vmatprep.subr.bf16.mxu0 0
        %1764 = vmatpush1.bf16.xpose.msra.mxu0 0
        %1765 = vmatprep.subr.bf16.mxu0 0
        %1766 = vmatpush1.bf16.xpose.msra.mxu0 0
        %1767 = vmatprep.subr.bf16.mxu0 0
        %1768 = vmatpush1.bf16.xpose.msra.mxu0 0
        %1769 = vmatprep.subr.bf16.mxu0 0
        %1770 = vmatpush1.bf16.xpose.msra.mxu0 0
        %1771 = vmatprep.subr.bf16.mxu0 0
        %1772 = vmatpush1.bf16.xpose.msra.mxu0 0
        %1773 = vmatprep.subr.bf16.mxu0 0
        %1774 = vmatpush1.bf16.xpose.msra.mxu0 0
        %1775 = vmatprep.subr.bf16.mxu0 0
        %1776 = vmatpush1.bf16.xpose.msra.mxu0 %v1759
        %1777 = vmatprep.subr.bf16.mxu0 0
        %1778 = vmatpush2.bf16.xpose.msra.mxu0 0
        %1779 = vmatprep.subr.bf16.mxu0 0
        %1780 = vmatpush2.bf16.xpose.msra.mxu0 0
        %1781 = vmatprep.subr.bf16.mxu0 0
        %1782 = vmatpush2.bf16.xpose.msra.mxu0 0
        %1783 = vmatprep.subr.bf16.mxu0 0
        %1784 = vmatpush2.bf16.xpose.msra.mxu0 0
        %1785 = vmatprep.subr.bf16.mxu0 0
        %1786 = vmatpush2.bf16.xpose.msra.mxu0 0
        %1787 = vmatprep.subr.bf16.mxu0 0
        %1788 = vmatpush2.bf16.xpose.msra.mxu0 0
        %1789 = vmatprep.subr.bf16.mxu0 0
        %1790 = vmatpush2.bf16.xpose.msra.mxu0 0
        %1791 = vmatprep.subr.bf16.mxu0 0
        %1792 = vmatpush2.bf16.xpose.msra.mxu0 0
        %1793 = vmatprep.mubr.bf16.mxu0 0
        %1794 = vmatmul.mubr.bf16.gmra.mxu0 %v1758
        %v1795 = vpop.f32.mrf.mxu0
        %v1796 = vadd.f32 0.0, %v1795
        %v1797 = vpop.f32.mrf.mxu0
        %v1798 = vpop.f32.mrf.mxu0
        %v1799 = vpop.f32.mrf.mxu0
        %1800 = vdwg.mxu0
        %v1801 = vsel %vm1175, %v1796, -inf
        %1802 = vmax.xlane.f32.xlu0 %v1801
        %v1803 = vpop.xlane.xlu0 %1802
        %v1804 = vsub.f32 %v1796, %v1803
        %v1805 = vmul.f32 %v1804, 1.442695
        %v1806 = vpow.pop %v1805
        %v1807 = vsel %vm1175, %v1806, 0.0
        %1808 = vadd.xlane.f32.xlu0 %v1807
        %v1809 = vpop.xlane.xlu0 %1808
        %v1810 = vpack.c.bf16 %v1806, %v1806
        %v1812 = vsel %vm1175, %v1810, 0
        %v1815 = vsel %vm1189, %v1760, 0
        %1817 = vmatprep.subr.bf16.mxu0 0
        %1818 = vmatpush1.bf16.msra.mxu0 0
        %1819 = vmatprep.subr.bf16.mxu0 0
        %1820 = vmatpush1.bf16.msra.mxu0 0
        %1821 = vmatprep.subr.bf16.mxu0 0
        %1822 = vmatpush1.bf16.msra.mxu0 0
        %1823 = vmatprep.subr.bf16.mxu0 0
        %1824 = vmatpush1.bf16.msra.mxu0 0
        %1825 = vmatprep.subr.bf16.mxu0 0
        %1826 = vmatpush1.bf16.msra.mxu0 0
        %1827 = vmatprep.subr.bf16.mxu0 0
        %1828 = vmatpush1.bf16.msra.mxu0 0
        %1829 = vmatprep.subr.bf16.mxu0 0
        %1830 = vmatpush1.bf16.msra.mxu0 0
        %1831 = vmatprep.subr.bf16.mxu0 0
        %1832 = vmatpush1.bf16.msra.mxu0 %v1815
        %1833 = vmatprep.subr.bf16.mxu0 0
        %1834 = vmatpush2.bf16.msra.mxu0 0
        %1835 = vmatprep.subr.bf16.mxu0 0
        %1836 = vmatpush2.bf16.msra.mxu0 0
        %1837 = vmatprep.subr.bf16.mxu0 0
        %1838 = vmatpush2.bf16.msra.mxu0 0
        %1839 = vmatprep.subr.bf16.mxu0 0
        %1840 = vmatpush2.bf16.msra.mxu0 0
        %1841 = vmatprep.subr.bf16.mxu0 0
        %1842 = vmatpush2.bf16.msra.mxu0 0
        %1843 = vmatprep.subr.bf16.mxu0 0
        %1844 = vmatpush2.bf16.msra.mxu0 0
        %1845 = vmatprep.subr.bf16.mxu0 0
        %1846 = vmatpush2.bf16.msra.mxu0 0
        %1847 = vmatprep.subr.bf16.mxu0 0
        %1848 = vmatpush2.bf16.msra.mxu0 0
        %1849 = vmatprep.mubr.bf16.mxu0 0
        %1850 = vmatmul.mubr.bf16.gmra.mxu0 %v1812
        %v1851 = vpop.f32.mrf.mxu0
        %v1852 = vadd.f32 0.0, %v1851
        %v1853 = vpop.f32.mrf.mxu0
        %v1854 = vpop.f32.mrf.mxu0
        %v1855 = vpop.f32.mrf.mxu0
        %1856 = vdwg.mxu0
        %v1857 = vrcp.pop %v1809
        %v1858 = vmul.f32 %v1857, 0.17677669
        %v1859 = vmul.f32 %v1852, %v1858
        %v1860 = vpack.c.bf16 %v1859, %v1859
        %1861 = vst [vmem:[#allocation2 + $0x18] sm:$0xf] %v1860
        %v1862 = vpack.c.bf16 %v800, %v800
        %v1863 = vpack.c.bf16 %v964, %v964
        %v1864 = vpack.c.bf16 %v1128, %v1128
        %1865 = vmatprep.subr.bf16.mxu0 0
        %1866 = vmatpush1.bf16.xpose.msra.mxu0 0
        %1867 = vmatprep.subr.bf16.mxu0 0
        %1868 = vmatpush1.bf16.xpose.msra.mxu0 0
        %1869 = vmatprep.subr.bf16.mxu0 0
        %1870 = vmatpush1.bf16.xpose.msra.mxu0 0
        %1871 = vmatprep.subr.bf16.mxu0 0
        %1872 = vmatpush1.bf16.xpose.msra.mxu0 0
        %1873 = vmatprep.subr.bf16.mxu0 0
        %1874 = vmatpush1.bf16.xpose.msra.mxu0 0
        %1875 = vmatprep.subr.bf16.mxu0 0
        %1876 = vmatpush1.bf16.xpose.msra.mxu0 0
        %1877 = vmatprep.subr.bf16.mxu0 0
        %1878 = vmatpush1.bf16.xpose.msra.mxu0 0
        %1879 = vmatprep.subr.bf16.mxu0 0
        %1880 = vmatpush1.bf16.xpose.msra.mxu0 %v1863
        %1881 = vmatprep.subr.bf16.mxu0 0
        %1882 = vmatpush2.bf16.xpose.msra.mxu0 0
        %1883 = vmatprep.subr.bf16.mxu0 0
        %1884 = vmatpush2.bf16.xpose.msra.mxu0 0
        %1885 = vmatprep.subr.bf16.mxu0 0
        %1886 = vmatpush2.bf16.xpose.msra.mxu0 0
        %1887 = vmatprep.subr.bf16.mxu0 0
        %1888 = vmatpush2.bf16.xpose.msra.mxu0 0
        %1889 = vmatprep.subr.bf16.mxu0 0
        %1890 = vmatpush2.bf16.xpose.msra.mxu0 0
        %1891 = vmatprep.subr.bf16.mxu0 0
        %1892 = vmatpush2.bf16.xpose.msra.mxu0 0
        %1893 = vmatprep.subr.bf16.mxu0 0
        %1894 = vmatpush2.bf16.xpose.msra.mxu0 0
        %1895 = vmatprep.subr.bf16.mxu0 0
        %1896 = vmatpush2.bf16.xpose.msra.mxu0 0
        %1897 = vmatprep.mubr.bf16.mxu0 0
        %1898 = vmatmul.mubr.bf16.gmra.mxu0 %v1862
        %v1899 = vpop.f32.mrf.mxu0
        %v1900 = vadd.f32 0.0, %v1899
        %v1901 = vpop.f32.mrf.mxu0
        %v1902 = vpop.f32.mrf.mxu0
        %v1903 = vpop.f32.mrf.mxu0
        %1904 = vdwg.mxu0
        %v1905 = vsel %vm1175, %v1900, -inf
        %1906 = vmax.xlane.f32.xlu0 %v1905
        %v1907 = vpop.xlane.xlu0 %1906
        %v1908 = vsub.f32 %v1900, %v1907
        %v1909 = vmul.f32 %v1908, 1.442695
        %v1910 = vpow.pop %v1909
        %v1911 = vsel %vm1175, %v1910, 0.0
        %1912 = vadd.xlane.f32.xlu0 %v1911
        %v1913 = vpop.xlane.xlu0 %1912
        %v1914 = vpack.c.bf16 %v1910, %v1910
        %v1916 = vsel %vm1175, %v1914, 0
        %v1919 = vsel %vm1189, %v1864, 0
        %1921 = vmatprep.subr.bf16.mxu0 0
        %1922 = vmatpush1.bf16.msra.mxu0 0
        %1923 = vmatprep.subr.bf16.mxu0 0
        %1924 = vmatpush1.bf16.msra.mxu0 0
        %1925 = vmatprep.subr.bf16.mxu0 0
        %1926 = vmatpush1.bf16.msra.mxu0 0
        %1927 = vmatprep.subr.bf16.mxu0 0
        %1928 = vmatpush1.bf16.msra.mxu0 0
        %1929 = vmatprep.subr.bf16.mxu0 0
        %1930 = vmatpush1.bf16.msra.mxu0 0
        %1931 = vmatprep.subr.bf16.mxu0 0
        %1932 = vmatpush1.bf16.msra.mxu0 0
        %1933 = vmatprep.subr.bf16.mxu0 0
        %1934 = vmatpush1.bf16.msra.mxu0 0
        %1935 = vmatprep.subr.bf16.mxu0 0
        %1936 = vmatpush1.bf16.msra.mxu0 %v1919
        %1937 = vmatprep.subr.bf16.mxu0 0
        %1938 = vmatpush2.bf16.msra.mxu0 0
        %1939 = vmatprep.subr.bf16.mxu0 0
        %1940 = vmatpush2.bf16.msra.mxu0 0
        %1941 = vmatprep.subr.bf16.mxu0 0
        %1942 = vmatpush2.bf16.msra.mxu0 0
        %1943 = vmatprep.subr.bf16.mxu0 0
        %1944 = vmatpush2.bf16.msra.mxu0 0
        %1945 = vmatprep.subr.bf16.mxu0 0
        %1946 = vmatpush2.bf16.msra.mxu0 0
        %1947 = vmatprep.subr.bf16.mxu0 0
        %1948 = vmatpush2.bf16.msra.mxu0 0
        %1949 = vmatprep.subr.bf16.mxu0 0
        %1950 = vmatpush2.bf16.msra.mxu0 0
        %1951 = vmatprep.subr.bf16.mxu0 0
        %1952 = vmatpush2.bf16.msra.mxu0 0
        %1953 = vmatprep.mubr.bf16.mxu0 0
        %1954 = vmatmul.mubr.bf16.gmra.mxu0 %v1916
        %v1955 = vpop.f32.mrf.mxu0
        %v1956 = vadd.f32 0.0, %v1955
        %v1957 = vpop.f32.mrf.mxu0
        %v1958 = vpop.f32.mrf.mxu0
        %v1959 = vpop.f32.mrf.mxu0
        %1960 = vdwg.mxu0
        %v1961 = vrcp.pop %v1913
        %v1962 = vmul.f32 %v1961, 0.17677669
        %v1963 = vmul.f32 %v1956, %v1962
        %v1964 = vpack.c.bf16 %v1963, %v1963
        %1965 = vst [vmem:[#allocation2 + $0x1c] sm:$0xf] %v1964
        %v1966 = vld [vmem:[#allocation2] sm:$0xff]
        %v1967 = vld [vmem:[#allocation2 + $0x8] sm:$0xff]
        %v1968 = vld [vmem:[#allocation2 + $0x10] sm:$0xff]
        %v1969 = vld [vmem:[#allocation2 + $0x18] sm:$0xff]
        %v1970 = vld [vmem:[%s2] sm:$0xf]
        %v1971 = vld [vmem:[%s2 + $0x4] sm:$0xf]
        %v1972 = vld [vmem:[%s2 + $0x8] sm:$0xf]
        %v1973 = vld [vmem:[%s2 + $0xc] sm:$0xf]
        %v1974 = vld [vmem:[%s2 + $0x10] sm:$0xf]
        %v1975 = vld [vmem:[%s2 + $0x14] sm:$0xf]
        %v1976 = vld [vmem:[%s2 + $0x18] sm:$0xf]
        %v1977 = vld [vmem:[%s2 + $0x1c] sm:$0xf]
        %v1978 = vld [vmem:[%s2 + $0x20] sm:$0xf]
        %v1979 = vld [vmem:[%s2 + $0x24] sm:$0xf]
        %v1980 = vld [vmem:[%s2 + $0x28] sm:$0xf]
        %v1981 = vld [vmem:[%s2 + $0x2c] sm:$0xf]
        %v1982 = vld [vmem:[%s2 + $0x30] sm:$0xf]
        %v1983 = vld [vmem:[%s2 + $0x34] sm:$0xf]
        %v1984 = vld [vmem:[%s2 + $0x38] sm:$0xf]
        %v1985 = vld [vmem:[%s2 + $0x3c] sm:$0xf]
        %v1986 = vld [vmem:[%s2 + $0x40] sm:$0xf]
        %v1987 = vld [vmem:[%s2 + $0x44] sm:$0xf]
        %v1988 = vld [vmem:[%s2 + $0x48] sm:$0xf]
        %v1989 = vld [vmem:[%s2 + $0x4c] sm:$0xf]
        %v1990 = vld [vmem:[%s2 + $0x50] sm:$0xf]
        %v1991 = vld [vmem:[%s2 + $0x54] sm:$0xf]
        %v1992 = vld [vmem:[%s2 + $0x58] sm:$0xf]
        %v1993 = vld [vmem:[%s2 + $0x5c] sm:$0xf]
        %v1994 = vld [vmem:[%s2 + $0x60] sm:$0xf]
        %v1995 = vld [vmem:[%s2 + $0x64] sm:$0xf]
        %v1996 = vld [vmem:[%s2 + $0x68] sm:$0xf]
        %v1997 = vld [vmem:[%s2 + $0x6c] sm:$0xf]
        %v1998 = vld [vmem:[%s2 + $0x70] sm:$0xf]
        %v1999 = vld [vmem:[%s2 + $0x74] sm:$0xf]
        %v2000 = vld [vmem:[%s2 + $0x78] sm:$0xf]
        %v2001 = vld [vmem:[%s2 + $0x7c] sm:$0xf]
        %v2002 = vld [vmem:[%s2 + $0x80] sm:$0xf]
        %v2003 = vld [vmem:[%s2 + $0x84] sm:$0xf]
        %v2004 = vld [vmem:[%s2 + $0x88] sm:$0xf]
        %v2005 = vld [vmem:[%s2 + $0x8c] sm:$0xf]
        %v2006 = vld [vmem:[%s2 + $0x90] sm:$0xf]
        %v2007 = vld [vmem:[%s2 + $0x94] sm:$0xf]
        %v2008 = vld [vmem:[%s2 + $0x98] sm:$0xf]
        %v2009 = vld [vmem:[%s2 + $0x9c] sm:$0xf]
        %v2010 = vld [vmem:[%s2 + $0xa0] sm:$0xf]
        %v2011 = vld [vmem:[%s2 + $0xa4] sm:$0xf]
        %v2012 = vld [vmem:[%s2 + $0xa8] sm:$0xf]
        %v2013 = vld [vmem:[%s2 + $0xac] sm:$0xf]
        %v2014 = vld [vmem:[%s2 + $0xb0] sm:$0xf]
        %v2015 = vld [vmem:[%s2 + $0xb4] sm:$0xf]
        %v2016 = vld [vmem:[%s2 + $0xb8] sm:$0xf]
        %v2017 = vld [vmem:[%s2 + $0xbc] sm:$0xf]
        %v2018 = vld [vmem:[%s2 + $0xc0] sm:$0xf]
        %v2019 = vld [vmem:[%s2 + $0xc4] sm:$0xf]
        %v2020 = vld [vmem:[%s2 + $0xc8] sm:$0xf]
        %v2021 = vld [vmem:[%s2 + $0xcc] sm:$0xf]
        %v2022 = vld [vmem:[%s2 + $0xd0] sm:$0xf]
        %v2023 = vld [vmem:[%s2 + $0xd4] sm:$0xf]
        %v2024 = vld [vmem:[%s2 + $0xd8] sm:$0xf]
        %v2025 = vld [vmem:[%s2 + $0xdc] sm:$0xf]
        %v2026 = vld [vmem:[%s2 + $0xe0] sm:$0xf]
        %v2027 = vld [vmem:[%s2 + $0xe4] sm:$0xf]
        %v2028 = vld [vmem:[%s2 + $0xe8] sm:$0xf]
        %v2029 = vld [vmem:[%s2 + $0xec] sm:$0xf]
        %v2030 = vld [vmem:[%s2 + $0xf0] sm:$0xf]
        %v2031 = vld [vmem:[%s2 + $0xf4] sm:$0xf]
        %v2032 = vld [vmem:[%s2 + $0xf8] sm:$0xf]
        %v2033 = vld [vmem:[%s2 + $0xfc] sm:$0xf]
        %v2034 = vld [vmem:[%s2 + $0x100] sm:$0xf]
        %v2035 = vld [vmem:[%s2 + $0x104] sm:$0xf]
        %v2036 = vld [vmem:[%s2 + $0x108] sm:$0xf]
        %v2037 = vld [vmem:[%s2 + $0x10c] sm:$0xf]
        %v2038 = vld [vmem:[%s2 + $0x110] sm:$0xf]
        %v2039 = vld [vmem:[%s2 + $0x114] sm:$0xf]
        %v2040 = vld [vmem:[%s2 + $0x118] sm:$0xf]
        %v2041 = vld [vmem:[%s2 + $0x11c] sm:$0xf]
        %v2042 = vld [vmem:[%s2 + $0x120] sm:$0xf]
        %v2043 = vld [vmem:[%s2 + $0x124] sm:$0xf]
        %v2044 = vld [vmem:[%s2 + $0x128] sm:$0xf]
        %v2045 = vld [vmem:[%s2 + $0x12c] sm:$0xf]
        %v2046 = vld [vmem:[%s2 + $0x130] sm:$0xf]
        %v2047 = vld [vmem:[%s2 + $0x134] sm:$0xf]
        %v2048 = vld [vmem:[%s2 + $0x138] sm:$0xf]
        %v2049 = vld [vmem:[%s2 + $0x13c] sm:$0xf]
        %v2050 = vld [vmem:[%s2 + $0x140] sm:$0xf]
        %v2051 = vld [vmem:[%s2 + $0x144] sm:$0xf]
        %v2052 = vld [vmem:[%s2 + $0x148] sm:$0xf]
        %v2053 = vld [vmem:[%s2 + $0x14c] sm:$0xf]
        %v2054 = vld [vmem:[%s2 + $0x150] sm:$0xf]
        %v2055 = vld [vmem:[%s2 + $0x154] sm:$0xf]
        %v2056 = vld [vmem:[%s2 + $0x158] sm:$0xf]
        %v2057 = vld [vmem:[%s2 + $0x15c] sm:$0xf]
        %v2058 = vld [vmem:[%s2 + $0x160] sm:$0xf]
        %v2059 = vld [vmem:[%s2 + $0x164] sm:$0xf]
        %v2060 = vld [vmem:[%s2 + $0x168] sm:$0xf]
        %v2061 = vld [vmem:[%s2 + $0x16c] sm:$0xf]
        %v2062 = vld [vmem:[%s2 + $0x170] sm:$0xf]
        %v2063 = vld [vmem:[%s2 + $0x174] sm:$0xf]
        %v2064 = vld [vmem:[%s2 + $0x178] sm:$0xf]
        %v2065 = vld [vmem:[%s2 + $0x17c] sm:$0xf]
        %v2066 = vld [vmem:[%s2 + $0x180] sm:$0xf]
        %v2067 = vld [vmem:[%s2 + $0x184] sm:$0xf]
        %v2068 = vld [vmem:[%s2 + $0x188] sm:$0xf]
        %v2069 = vld [vmem:[%s2 + $0x18c] sm:$0xf]
        %v2070 = vld [vmem:[%s2 + $0x190] sm:$0xf]
        %v2071 = vld [vmem:[%s2 + $0x194] sm:$0xf]
        %v2072 = vld [vmem:[%s2 + $0x198] sm:$0xf]
        %v2073 = vld [vmem:[%s2 + $0x19c] sm:$0xf]
        %v2074 = vld [vmem:[%s2 + $0x1a0] sm:$0xf]
        %v2075 = vld [vmem:[%s2 + $0x1a4] sm:$0xf]
        %v2076 = vld [vmem:[%s2 + $0x1a8] sm:$0xf]
        %v2077 = vld [vmem:[%s2 + $0x1ac] sm:$0xf]
        %v2078 = vld [vmem:[%s2 + $0x1b0] sm:$0xf]
        %v2079 = vld [vmem:[%s2 + $0x1b4] sm:$0xf]
        %v2080 = vld [vmem:[%s2 + $0x1b8] sm:$0xf]
        %v2081 = vld [vmem:[%s2 + $0x1bc] sm:$0xf]
        %v2082 = vld [vmem:[%s2 + $0x1c0] sm:$0xf]
        %v2083 = vld [vmem:[%s2 + $0x1c4] sm:$0xf]
        %v2084 = vld [vmem:[%s2 + $0x1c8] sm:$0xf]
        %v2085 = vld [vmem:[%s2 + $0x1cc] sm:$0xf]
        %v2086 = vld [vmem:[%s2 + $0x1d0] sm:$0xf]
        %v2087 = vld [vmem:[%s2 + $0x1d4] sm:$0xf]
        %v2088 = vld [vmem:[%s2 + $0x1d8] sm:$0xf]
        %v2089 = vld [vmem:[%s2 + $0x1dc] sm:$0xf]
        %v2090 = vld [vmem:[%s2 + $0x1e0] sm:$0xf]
        %v2091 = vld [vmem:[%s2 + $0x1e4] sm:$0xf]
        %v2092 = vld [vmem:[%s2 + $0x1e8] sm:$0xf]
        %v2093 = vld [vmem:[%s2 + $0x1ec] sm:$0xf]
        %v2094 = vld [vmem:[%s2 + $0x1f0] sm:$0xf]
        %v2095 = vld [vmem:[%s2 + $0x1f4] sm:$0xf]
        %v2096 = vld [vmem:[%s2 + $0x1f8] sm:$0xf]
        %v2097 = vld [vmem:[%s2 + $0x1fc] sm:$0xf]
        %v2098 = vld [vmem:[%s4] sm:$0x1]
        %v2100 = vlaneseq
        %v2101 = vshrl.u32 %v2100, 7
        %v2102 = vsub.s32 0, %v2101
        %v2103 = vrot.slane %v2098, %v2102
        %v2109 = vunpack.c.l.b16 %v1966
        %v2110 = vunpack.c.h.b16 %v1966
        %v2111 = vunpack.c.l.b16 %v1967
        %v2112 = vunpack.c.h.b16 %v1967
        %v2113 = vunpack.c.l.b16 %v1968
        %v2114 = vunpack.c.h.b16 %v1968
        %v2115 = vunpack.c.l.b16 %v1969
        %v2116 = vunpack.c.h.b16 %v1969
        %v2117 = vpack.c.b16 %v2109, %v2109
        %v2118 = vpack.c.b16 %v2110, %v2110
        %v2119 = vpack.c.b16 %v2111, %v2111
        %v2120 = vpack.c.b16 %v2112, %v2112
        %v2121 = vpack.c.b16 %v2113, %v2113
        %v2122 = vpack.c.b16 %v2114, %v2114
        %v2123 = vpack.c.b16 %v2115, %v2115
        %v2124 = vpack.c.b16 %v2116, %v2116
        %v2261 = vunpack.c.l.b16 %v1970
        %v2262 = vunpack.c.l.b16 %v1971
        %v2263 = vunpack.c.l.b16 %v1972
        %v2264 = vunpack.c.l.b16 %v1973
        %v2265 = vunpack.c.l.b16 %v1974
        %v2266 = vunpack.c.l.b16 %v1975
        %v2267 = vunpack.c.l.b16 %v1976
        %v2268 = vunpack.c.l.b16 %v1977
        %v2269 = vunpack.c.l.b16 %v1978
        %v2270 = vunpack.c.l.b16 %v1979
        %v2271 = vunpack.c.l.b16 %v1980
        %v2272 = vunpack.c.l.b16 %v1981
        %v2273 = vunpack.c.l.b16 %v1982
        %v2274 = vunpack.c.l.b16 %v1983
        %v2275 = vunpack.c.l.b16 %v1984
        %v2276 = vunpack.c.l.b16 %v1985
        %v2277 = vunpack.c.l.b16 %v1986
        %v2278 = vunpack.c.l.b16 %v1987
        %v2279 = vunpack.c.l.b16 %v1988
        %v2280 = vunpack.c.l.b16 %v1989
        %v2281 = vunpack.c.l.b16 %v1990
        %v2282 = vunpack.c.l.b16 %v1991
        %v2283 = vunpack.c.l.b16 %v1992
        %v2284 = vunpack.c.l.b16 %v1993
        %v2285 = vunpack.c.l.b16 %v1994
        %v2286 = vunpack.c.l.b16 %v1995
        %v2287 = vunpack.c.l.b16 %v1996
        %v2288 = vunpack.c.l.b16 %v1997
        %v2289 = vunpack.c.l.b16 %v1998
        %v2290 = vunpack.c.l.b16 %v1999
        %v2291 = vunpack.c.l.b16 %v2000
        %v2292 = vunpack.c.l.b16 %v2001
        %v2293 = vunpack.c.l.b16 %v2002
        %v2294 = vunpack.c.l.b16 %v2003
        %v2295 = vunpack.c.l.b16 %v2004
        %v2296 = vunpack.c.l.b16 %v2005
        %v2297 = vunpack.c.l.b16 %v2006
        %v2298 = vunpack.c.l.b16 %v2007
        %v2299 = vunpack.c.l.b16 %v2008
        %v2300 = vunpack.c.l.b16 %v2009
        %v2301 = vunpack.c.l.b16 %v2010
        %v2302 = vunpack.c.l.b16 %v2011
        %v2303 = vunpack.c.l.b16 %v2012
        %v2304 = vunpack.c.l.b16 %v2013
        %v2305 = vunpack.c.l.b16 %v2014
        %v2306 = vunpack.c.l.b16 %v2015
        %v2307 = vunpack.c.l.b16 %v2016
        %v2308 = vunpack.c.l.b16 %v2017
        %v2309 = vunpack.c.l.b16 %v2018
        %v2310 = vunpack.c.l.b16 %v2019
        %v2311 = vunpack.c.l.b16 %v2020
        %v2312 = vunpack.c.l.b16 %v2021
        %v2313 = vunpack.c.l.b16 %v2022
        %v2314 = vunpack.c.l.b16 %v2023
        %v2315 = vunpack.c.l.b16 %v2024
        %v2316 = vunpack.c.l.b16 %v2025
        %v2317 = vunpack.c.l.b16 %v2026
        %v2318 = vunpack.c.l.b16 %v2027
        %v2319 = vunpack.c.l.b16 %v2028
        %v2320 = vunpack.c.l.b16 %v2029
        %v2321 = vunpack.c.l.b16 %v2030
        %v2322 = vunpack.c.l.b16 %v2031
        %v2323 = vunpack.c.l.b16 %v2032
        %v2324 = vunpack.c.l.b16 %v2033
        %v2325 = vunpack.c.l.b16 %v2034
        %v2326 = vunpack.c.l.b16 %v2035
        %v2327 = vunpack.c.l.b16 %v2036
        %v2328 = vunpack.c.l.b16 %v2037
        %v2329 = vunpack.c.l.b16 %v2038
        %v2330 = vunpack.c.l.b16 %v2039
        %v2331 = vunpack.c.l.b16 %v2040
        %v2332 = vunpack.c.l.b16 %v2041
        %v2333 = vunpack.c.l.b16 %v2042
        %v2334 = vunpack.c.l.b16 %v2043
        %v2335 = vunpack.c.l.b16 %v2044
        %v2336 = vunpack.c.l.b16 %v2045
        %v2337 = vunpack.c.l.b16 %v2046
        %v2338 = vunpack.c.l.b16 %v2047
        %v2339 = vunpack.c.l.b16 %v2048
        %v2340 = vunpack.c.l.b16 %v2049
        %v2341 = vunpack.c.l.b16 %v2050
        %v2342 = vunpack.c.l.b16 %v2051
        %v2343 = vunpack.c.l.b16 %v2052
        %v2344 = vunpack.c.l.b16 %v2053
        %v2345 = vunpack.c.l.b16 %v2054
        %v2346 = vunpack.c.l.b16 %v2055
        %v2347 = vunpack.c.l.b16 %v2056
        %v2348 = vunpack.c.l.b16 %v2057
        %v2349 = vunpack.c.l.b16 %v2058
        %v2350 = vunpack.c.l.b16 %v2059
        %v2351 = vunpack.c.l.b16 %v2060
        %v2352 = vunpack.c.l.b16 %v2061
        %v2353 = vunpack.c.l.b16 %v2062
        %v2354 = vunpack.c.l.b16 %v2063
        %v2355 = vunpack.c.l.b16 %v2064
        %v2356 = vunpack.c.l.b16 %v2065
        %v2357 = vunpack.c.l.b16 %v2066
        %v2358 = vunpack.c.l.b16 %v2067
        %v2359 = vunpack.c.l.b16 %v2068
        %v2360 = vunpack.c.l.b16 %v2069
        %v2361 = vunpack.c.l.b16 %v2070
        %v2362 = vunpack.c.l.b16 %v2071
        %v2363 = vunpack.c.l.b16 %v2072
        %v2364 = vunpack.c.l.b16 %v2073
        %v2365 = vunpack.c.l.b16 %v2074
        %v2366 = vunpack.c.l.b16 %v2075
        %v2367 = vunpack.c.l.b16 %v2076
        %v2368 = vunpack.c.l.b16 %v2077
        %v2369 = vunpack.c.l.b16 %v2078
        %v2370 = vunpack.c.l.b16 %v2079
        %v2371 = vunpack.c.l.b16 %v2080
        %v2372 = vunpack.c.l.b16 %v2081
        %v2373 = vunpack.c.l.b16 %v2082
        %v2374 = vunpack.c.l.b16 %v2083
        %v2375 = vunpack.c.l.b16 %v2084
        %v2376 = vunpack.c.l.b16 %v2085
        %v2377 = vunpack.c.l.b16 %v2086
        %v2378 = vunpack.c.l.b16 %v2087
        %v2379 = vunpack.c.l.b16 %v2088
        %v2380 = vunpack.c.l.b16 %v2089
        %v2381 = vunpack.c.l.b16 %v2090
        %v2382 = vunpack.c.l.b16 %v2091
        %v2383 = vunpack.c.l.b16 %v2092
        %v2384 = vunpack.c.l.b16 %v2093
        %v2385 = vunpack.c.l.b16 %v2094
        %v2386 = vunpack.c.l.b16 %v2095
        %v2387 = vunpack.c.l.b16 %v2096
        %v2388 = vunpack.c.l.b16 %v2097
        %v2389 = vpack.c.b16 %v2262, %v2261
        %v2390 = vpack.c.b16 %v2264, %v2263
        %v2391 = vpack.c.b16 %v2266, %v2265
        %v2392 = vpack.c.b16 %v2268, %v2267
        %v2393 = vpack.c.b16 %v2270, %v2269
        %v2394 = vpack.c.b16 %v2272, %v2271
        %v2395 = vpack.c.b16 %v2274, %v2273
        %v2396 = vpack.c.b16 %v2276, %v2275
        %v2397 = vpack.c.b16 %v2278, %v2277
        %v2398 = vpack.c.b16 %v2280, %v2279
        %v2399 = vpack.c.b16 %v2282, %v2281
        %v2400 = vpack.c.b16 %v2284, %v2283
        %v2401 = vpack.c.b16 %v2286, %v2285
        %v2402 = vpack.c.b16 %v2288, %v2287
        %v2403 = vpack.c.b16 %v2290, %v2289
        %v2404 = vpack.c.b16 %v2292, %v2291
        %v2405 = vpack.c.b16 %v2294, %v2293
        %v2406 = vpack.c.b16 %v2296, %v2295
        %v2407 = vpack.c.b16 %v2298, %v2297
        %v2408 = vpack.c.b16 %v2300, %v2299
        %v2409 = vpack.c.b16 %v2302, %v2301
        %v2410 = vpack.c.b16 %v2304, %v2303
        %v2411 = vpack.c.b16 %v2306, %v2305
        %v2412 = vpack.c.b16 %v2308, %v2307
        %v2413 = vpack.c.b16 %v2310, %v2309
        %v2414 = vpack.c.b16 %v2312, %v2311
        %v2415 = vpack.c.b16 %v2314, %v2313
        %v2416 = vpack.c.b16 %v2316, %v2315
        %v2417 = vpack.c.b16 %v2318, %v2317
        %v2418 = vpack.c.b16 %v2320, %v2319
        %v2419 = vpack.c.b16 %v2322, %v2321
        %v2420 = vpack.c.b16 %v2324, %v2323
        %v2421 = vpack.c.b16 %v2326, %v2325
        %v2422 = vpack.c.b16 %v2328, %v2327
        %v2423 = vpack.c.b16 %v2330, %v2329
        %v2424 = vpack.c.b16 %v2332, %v2331
        %v2425 = vpack.c.b16 %v2334, %v2333
        %v2426 = vpack.c.b16 %v2336, %v2335
        %v2427 = vpack.c.b16 %v2338, %v2337
        %v2428 = vpack.c.b16 %v2340, %v2339
        %v2429 = vpack.c.b16 %v2342, %v2341
        %v2430 = vpack.c.b16 %v2344, %v2343
        %v2431 = vpack.c.b16 %v2346, %v2345
        %v2432 = vpack.c.b16 %v2348, %v2347
        %v2433 = vpack.c.b16 %v2350, %v2349
        %v2434 = vpack.c.b16 %v2352, %v2351
        %v2435 = vpack.c.b16 %v2354, %v2353
        %v2436 = vpack.c.b16 %v2356, %v2355
        %v2437 = vpack.c.b16 %v2358, %v2357
        %v2438 = vpack.c.b16 %v2360, %v2359
        %v2439 = vpack.c.b16 %v2362, %v2361
        %v2440 = vpack.c.b16 %v2364, %v2363
        %v2441 = vpack.c.b16 %v2366, %v2365
        %v2442 = vpack.c.b16 %v2368, %v2367
        %v2443 = vpack.c.b16 %v2370, %v2369
        %v2444 = vpack.c.b16 %v2372, %v2371
        %v2445 = vpack.c.b16 %v2374, %v2373
        %v2446 = vpack.c.b16 %v2376, %v2375
        %v2447 = vpack.c.b16 %v2378, %v2377
        %v2448 = vpack.c.b16 %v2380, %v2379
        %v2449 = vpack.c.b16 %v2382, %v2381
        %v2450 = vpack.c.b16 %v2384, %v2383
        %v2451 = vpack.c.b16 %v2386, %v2385
        %v2452 = vpack.c.b16 %v2388, %v2387
        %2517 = vmatprep.subr.bf16.mxu0 0
        %2518 = vmatpush1.bf16.msra.mxu0 %v2396
        %2519 = vmatprep.subr.bf16.mxu0 0
        %2520 = vmatpush1.bf16.msra.mxu0 %v2395
        %2521 = vmatprep.subr.bf16.mxu0 0
        %2522 = vmatpush1.bf16.msra.mxu0 %v2394
        %2523 = vmatprep.subr.bf16.mxu0 0
        %2524 = vmatpush1.bf16.msra.mxu0 %v2393
        %2525 = vmatprep.subr.bf16.mxu0 0
        %2526 = vmatpush1.bf16.msra.mxu0 %v2392
        %2527 = vmatprep.subr.bf16.mxu0 0
        %2528 = vmatpush1.bf16.msra.mxu0 %v2391
        %2529 = vmatprep.subr.bf16.mxu0 0
        %2530 = vmatpush1.bf16.msra.mxu0 %v2390
        %2531 = vmatprep.subr.bf16.mxu0 0
        %2532 = vmatpush1.bf16.msra.mxu0 %v2389
        %2533 = vmatprep.subr.bf16.mxu0 0
        %2534 = vmatpush2.bf16.msra.mxu0 %v2404
        %2535 = vmatprep.subr.bf16.mxu0 0
        %2536 = vmatpush2.bf16.msra.mxu0 %v2403
        %2537 = vmatprep.subr.bf16.mxu0 0
        %2538 = vmatpush2.bf16.msra.mxu0 %v2402
        %2539 = vmatprep.subr.bf16.mxu0 0
        %2540 = vmatpush2.bf16.msra.mxu0 %v2401
        %2541 = vmatprep.subr.bf16.mxu0 0
        %2542 = vmatpush2.bf16.msra.mxu0 %v2400
        %2543 = vmatprep.subr.bf16.mxu0 0
        %2544 = vmatpush2.bf16.msra.mxu0 %v2399
        %2545 = vmatprep.subr.bf16.mxu0 0
        %2546 = vmatpush2.bf16.msra.mxu0 %v2398
        %2547 = vmatprep.subr.bf16.mxu0 0
        %2548 = vmatpush2.bf16.msra.mxu0 %v2397
        %2549 = vmatprep.mubr.bf16.mxu0 %v2118
        %2550 = vmatmul.mubr.bf16.gmra.mxu0 %v2117
        %v2551 = vpop.f32.mrf.mxu0
        %v2552 = vadd.f32 %v2103, %v2551
        %v2553 = vpop.f32.mrf.mxu0
        %v2554 = vpop.f32.mrf.mxu0
        %v2555 = vpop.f32.mrf.mxu0
        %2556 = vdwg.mxu0
        %2557 = vmatprep.subr.bf16.mxu0 0
        %2558 = vmatpush1.bf16.msra.mxu0 %v2412
        %2559 = vmatprep.subr.bf16.mxu0 0
        %2560 = vmatpush1.bf16.msra.mxu0 %v2411
        %2561 = vmatprep.subr.bf16.mxu0 0
        %2562 = vmatpush1.bf16.msra.mxu0 %v2410
        %2563 = vmatprep.subr.bf16.mxu0 0
        %2564 = vmatpush1.bf16.msra.mxu0 %v2409
        %2565 = vmatprep.subr.bf16.mxu0 0
        %2566 = vmatpush1.bf16.msra.mxu0 %v2408
        %2567 = vmatprep.subr.bf16.mxu0 0
        %2568 = vmatpush1.bf16.msra.mxu0 %v2407
        %2569 = vmatprep.subr.bf16.mxu0 0
        %2570 = vmatpush1.bf16.msra.mxu0 %v2406
        %2571 = vmatprep.subr.bf16.mxu0 0
        %2572 = vmatpush1.bf16.msra.mxu0 %v2405
        %2573 = vmatprep.subr.bf16.mxu0 0
        %2574 = vmatpush2.bf16.msra.mxu0 %v2420
        %2575 = vmatprep.subr.bf16.mxu0 0
        %2576 = vmatpush2.bf16.msra.mxu0 %v2419
        %2577 = vmatprep.subr.bf16.mxu0 0
        %2578 = vmatpush2.bf16.msra.mxu0 %v2418
        %2579 = vmatprep.subr.bf16.mxu0 0
        %2580 = vmatpush2.bf16.msra.mxu0 %v2417
        %2581 = vmatprep.subr.bf16.mxu0 0
        %2582 = vmatpush2.bf16.msra.mxu0 %v2416
        %2583 = vmatprep.subr.bf16.mxu0 0
        %2584 = vmatpush2.bf16.msra.mxu0 %v2415
        %2585 = vmatprep.subr.bf16.mxu0 0
        %2586 = vmatpush2.bf16.msra.mxu0 %v2414
        %2587 = vmatprep.subr.bf16.mxu0 0
        %2588 = vmatpush2.bf16.msra.mxu0 %v2413
        %2589 = vmatprep.mubr.bf16.mxu0 %v2120
        %2590 = vmatmul.mubr.bf16.gmra.mxu0 %v2119
        %v2591 = vpop.f32.mrf.mxu0
        %v2592 = vadd.f32 %v2552, %v2591
        %v2593 = vpop.f32.mrf.mxu0
        %v2594 = vpop.f32.mrf.mxu0
        %v2595 = vpop.f32.mrf.mxu0
        %2596 = vdwg.mxu0
        %2597 = vmatprep.subr.bf16.mxu0 0
        %2598 = vmatpush1.bf16.msra.mxu0 %v2428
        %2599 = vmatprep.subr.bf16.mxu0 0
        %2600 = vmatpush1.bf16.msra.mxu0 %v2427
        %2601 = vmatprep.subr.bf16.mxu0 0
        %2602 = vmatpush1.bf16.msra.mxu0 %v2426
        %2603 = vmatprep.subr.bf16.mxu0 0
        %2604 = vmatpush1.bf16.msra.mxu0 %v2425
        %2605 = vmatprep.subr.bf16.mxu0 0
        %2606 = vmatpush1.bf16.msra.mxu0 %v2424
        %2607 = vmatprep.subr.bf16.mxu0 0
        %2608 = vmatpush1.bf16.msra.mxu0 %v2423
        %2609 = vmatprep.subr.bf16.mxu0 0
        %2610 = vmatpush1.bf16.msra.mxu0 %v2422
        %2611 = vmatprep.subr.bf16.mxu0 0
        %2612 = vmatpush1.bf16.msra.mxu0 %v2421
        %2613 = vmatprep.subr.bf16.mxu0 0
        %2614 = vmatpush2.bf16.msra.mxu0 %v2436
        %2615 = vmatprep.subr.bf16.mxu0 0
        %2616 = vmatpush2.bf16.msra.mxu0 %v2435
        %2617 = vmatprep.subr.bf16.mxu0 0
        %2618 = vmatpush2.bf16.msra.mxu0 %v2434
        %2619 = vmatprep.subr.bf16.mxu0 0
        %2620 = vmatpush2.bf16.msra.mxu0 %v2433
        %2621 = vmatprep.subr.bf16.mxu0 0
        %2622 = vmatpush2.bf16.msra.mxu0 %v2432
        %2623 = vmatprep.subr.bf16.mxu0 0
        %2624 = vmatpush2.bf16.msra.mxu0 %v2431
        %2625 = vmatprep.subr.bf16.mxu0 0
        %2626 = vmatpush2.bf16.msra.mxu0 %v2430
        %2627 = vmatprep.subr.bf16.mxu0 0
        %2628 = vmatpush2.bf16.msra.mxu0 %v2429
        %2629 = vmatprep.mubr.bf16.mxu0 %v2122
        %2630 = vmatmul.mubr.bf16.gmra.mxu0 %v2121
        %v2631 = vpop.f32.mrf.mxu0
        %v2632 = vadd.f32 %v2592, %v2631
        %v2633 = vpop.f32.mrf.mxu0
        %v2634 = vpop.f32.mrf.mxu0
        %v2635 = vpop.f32.mrf.mxu0
        %2636 = vdwg.mxu0
        %2637 = vmatprep.subr.bf16.mxu0 0
        %2638 = vmatpush1.bf16.msra.mxu0 %v2444
        %2639 = vmatprep.subr.bf16.mxu0 0
        %2640 = vmatpush1.bf16.msra.mxu0 %v2443
        %2641 = vmatprep.subr.bf16.mxu0 0
        %2642 = vmatpush1.bf16.msra.mxu0 %v2442
        %2643 = vmatprep.subr.bf16.mxu0 0
        %2644 = vmatpush1.bf16.msra.mxu0 %v2441
        %2645 = vmatprep.subr.bf16.mxu0 0
        %2646 = vmatpush1.bf16.msra.mxu0 %v2440
        %2647 = vmatprep.subr.bf16.mxu0 0
        %2648 = vmatpush1.bf16.msra.mxu0 %v2439
        %2649 = vmatprep.subr.bf16.mxu0 0
        %2650 = vmatpush1.bf16.msra.mxu0 %v2438
        %2651 = vmatprep.subr.bf16.mxu0 0
        %2652 = vmatpush1.bf16.msra.mxu0 %v2437
        %2653 = vmatprep.subr.bf16.mxu0 0
        %2654 = vmatpush2.bf16.msra.mxu0 %v2452
        %2655 = vmatprep.subr.bf16.mxu0 0
        %2656 = vmatpush2.bf16.msra.mxu0 %v2451
        %2657 = vmatprep.subr.bf16.mxu0 0
        %2658 = vmatpush2.bf16.msra.mxu0 %v2450
        %2659 = vmatprep.subr.bf16.mxu0 0
        %2660 = vmatpush2.bf16.msra.mxu0 %v2449
        %2661 = vmatprep.subr.bf16.mxu0 0
        %2662 = vmatpush2.bf16.msra.mxu0 %v2448
        %2663 = vmatprep.subr.bf16.mxu0 0
        %2664 = vmatpush2.bf16.msra.mxu0 %v2447
        %2665 = vmatprep.subr.bf16.mxu0 0
        %2666 = vmatpush2.bf16.msra.mxu0 %v2446
        %2667 = vmatprep.subr.bf16.mxu0 0
        %2668 = vmatpush2.bf16.msra.mxu0 %v2445
        %2669 = vmatprep.mubr.bf16.mxu0 %v2124
        %2670 = vmatmul.mubr.bf16.gmra.mxu0 %v2123
        %v2671 = vpop.f32.mrf.mxu0
        %v2672 = vadd.f32 %v2632, %v2671
        %v2673 = vpop.f32.mrf.mxu0
        %v2674 = vpop.f32.mrf.mxu0
        %v2675 = vpop.f32.mrf.mxu0
        %2676 = vdwg.mxu0
        %2677 = vst.msk [vmem:[%s215] sm:$0xff] %vm636, %v2672
        %s2678 = sand.u32 %s137, 1
        %s2679 = scalar_lea.sflag [#allocation4], %s2678
        %s2680 = sand.u32 %s137, 1
        %s2681 = smul.addr %s2680, 8
        %s2682 = scalar_lea.vmem [#allocation3], %s2681
        // Predicated region
        $region41: #{tpu_custom_call.1} parent=39 // pred_check
          %p2683 = pneg %p147
        $region42: #{tpu_custom_call.1} parent=39 // pred_check_branch
          %2685 = sbr.rel (%p2683) target = $region44
        $region43: #{tpu_custom_call.1} parent=39 // pred_region
          %s2687 = ssub.s32 128, 128
          %2688 = vsyncadd %s2679, %s2687
          %s2689 = smul.addr %s19, 128
          %s2690 = scalar_lea.hbm %s5, %s2689
          %s2692 = sshll.u32 %s2682, 4
          %s2693 = int_to_ptr.vmem [resolvable:$true] %s2692
          %2695 = dma.vmem_to_hbm [thread:$0]  %s2693, 128, %s2690, %s2679
        $region44: #{tpu_custom_call.1} parent=39 // pred_fallthru
          _
      $region40: #{tpu_custom_call.1} parent=5 // pred_fallthru
        _
      %p2696 = scmp.le.s32.totalorder 2, %s14
      // Predicated region
      $region45: #{tpu_custom_call.1} parent=5 // pred_check
        %p2697 = pneg %p2696
      $region46: #{tpu_custom_call.1} parent=5 // pred_check_branch
        %2699 = sbr.rel (%p2697) target = $region48
      $region47: #{tpu_custom_call.1} parent=5 // pred_region
        %s2700 = ssub.s32 %s14, 2
        // Predicated region
        $region49: #{tpu_custom_call.1} parent=47 // pred_check
          %p2701 = pneg %p153
        $region50: #{tpu_custom_call.1} parent=47 // pred_check_branch
          %2703 = sbr.rel (%p2701) target = $region52
        $region51: #{tpu_custom_call.1} parent=47 // pred_region
          %s2704 = sand.u32 %s138, 1
          %s2705 = scalar_lea.sflag [#allocation4], %s2704
          %s2706 = sand.u32 %s138, 1
          %s2707 = smul.addr %s2706, 8
          %s2708 = scalar_lea.vmem [#allocation3], %s2707
          %2709 = dma.done %s2705, 128
        $region52: #{tpu_custom_call.1} parent=47 // pred_fallthru
          _
      $region48: #{tpu_custom_call.1} parent=5 // pred_fallthru
        _
    $region6: #{tpu_custom_call.1} parent=1 // loop_footer
      %s18 = sadd.s32 1, %s14
    $region7: #{tpu_custom_call.1} parent=1 // loop_footer_branch
      %13 = sbr.rel target = $region3
    $region8: #{tpu_custom_call.1} parent=1 // loop_exit
      _
    %2710 = vsyncpa [#allocation4], 1
    %s2711 = scalar_lea.sflag [#allocation4], 1
    %2712 = vsyncpa %s2711, 1

</llo_original>
